<compile_context>
chip_gen: v5e
topology: v5e:2x2
jax: 0.10.0
libtpu: 0.0.40
codegen_flags: <defaults>
</compile_context>

<pallas_src>
import functools

import jax
import jax.numpy as jnp
from jax.experimental import pallas as pl
from jax.experimental.pallas import tpu as pltpu

LN_EPS = 1e-5


def _round_up(n, m):
    return (n + m - 1) // m * m


def _cdiv(a, b):
    return (a + b - 1) // b


def patch_embed_kernel(p_ref, w_ref, pg_ref, o_ref, *, e_real, e_pad):
    """Fused (tm, K) @ (K, E_pad) + bias + LayerNorm over e_real lanes."""
    # MXU matmul with f32 accumulation (inputs may be bf16 or f32).
    h = jnp.dot(p_ref[...], w_ref[...], preferred_element_type=jnp.float32)

    pg = pg_ref[...]                         # (3, E_pad) f32: [bias; gamma; beta]
    h = h + pg[0:1, :]                       # padded lanes of h stay exactly 0

    inv_e = 1.0 / float(e_real)
    mean = jnp.sum(h, axis=-1, keepdims=True) * inv_e      # padded lanes add 0
    centered = h - mean
    if e_real != e_pad:                      # compile-time branch: mask padding
        lane = jax.lax.broadcasted_iota(jnp.int32, (1, e_pad), 1)
        centered = jnp.where(lane < e_real, centered, 0.0)
    var = jnp.sum(centered * centered, axis=-1, keepdims=True) * inv_e
    y = centered * jax.lax.rsqrt(var + LN_EPS)
    # gamma/beta are zero-padded => padded output lanes are 0 (sliced off later).
    o_ref[...] = (y * pg[1:2, :] + pg[2:3, :]).astype(o_ref.dtype)


def patch_embed(x, params, *, patch_size, tm=None, use_bf16=True):
    """x: (B, in_chans, H, W) f32.  Returns (B, num_patches, embed_dim) f32."""
    B, Cin, H, W = x.shape
    p = patch_size
    Hp, Wp = H // p, W // p
    n_patches = Hp * Wp
    E = params["w"].shape[0]
    K = Cin * p * p
    N = B * n_patches

    compute_dtype = jnp.bfloat16 if use_bf16 else jnp.float32
    itemsize = jnp.dtype(compute_dtype).itemsize
    if tm is None:
        tm = 1024 if use_bf16 else 512       # v7x (64 MiB VMEM/TC) caps f32 at 512

    # --- im2col for the stride==kernel conv (single materialization) --------
    # Cast first so convert + transpose fuse into one bf16 copy.
    # (B, C, Hp, p, Wp, p) -> (B, Hp, Wp, C, p, p) -> (N, K), row-major patches.
    patches = (x.astype(compute_dtype)
               .reshape(B, Cin, Hp, p, Wp, p)
               .transpose(0, 2, 4, 1, 3, 5)
               .reshape(N, K))
    # TODO(synk): fully fuse im2col by keeping x in HBM (memory_space=pl.ANY)
    # and DMA-ing (Cin, p, p) patch slabs inside the kernel.

    w2d = params["w"].reshape(E, K).T.astype(compute_dtype)        # (K, E)

    # --- tiling: no K padding (block spans full K); pad E lanes to 128 ------
    E_pad = _round_up(E, 128)
    n_rows = _round_up(N, 8)
    n_steps = _cdiv(n_rows, tm)
    if n_steps == 1 and n_rows > 8:
        n_steps = 2                          # give both v7x TCs / megacore work
    tm_eff = _round_up(_cdiv(n_rows, n_steps), 8)
    N_pad = tm_eff * n_steps

    if N_pad > N:
        patches = jnp.pad(patches, ((0, N_pad - N), (0, 0)))
    w2d = jnp.pad(w2d, ((0, 0), (0, E_pad - E)))
    # bias / gamma / beta stacked into one (3, E_pad) f32 operand (zero-padded
    # lanes keep the masked LayerNorm and padded output lanes exactly 0).
    pg = jnp.pad(
        jnp.stack([params["b"], params["gamma"], params["beta"]]).astype(jnp.float32),
        ((0, 0), (0, E_pad - E)))

    row_map = lambda i: (i, 0)
    rep_map = lambda i: (0, 0)               # grid-invariant: DMA'd once

    blk_bytes = (2 * tm_eff * K * itemsize           # patches (double-buffered)
                 + K * E_pad * itemsize              # weight  (single-buffered)
                 + 3 * E_pad * 4                     # LN params
                 + 2 * tm_eff * E_pad * 4)           # output  (double-buffered)
    vmem_limit = int(min(48 * 1024 * 1024, max(32 * 1024 * 1024, 2 * blk_bytes)))

    cost = pl.CostEstimate(
        flops=2 * N * K * E,
        transcendentals=0,
        bytes_accessed=(N_pad * K * itemsize + K * E_pad * itemsize
                        + 3 * E_pad * 4 + N_pad * E_pad * 4),
    )

    out = pl.pallas_call(
        functools.partial(patch_embed_kernel, e_real=E, e_pad=E_pad),
        out_shape=jax.ShapeDtypeStruct((N_pad, E_pad), jnp.float32),
        grid_spec=pltpu.PrefetchScalarGridSpec(
            num_scalar_prefetch=0,
            grid=(N_pad // tm_eff,),
            in_specs=[
                pl.BlockSpec((tm_eff, K), row_map),            # patch rows
                pl.BlockSpec((K, E_pad), rep_map,
                             pipeline_mode=pl.Buffered(1)),    # proj weight
                pl.BlockSpec((3, E_pad), rep_map,
                             pipeline_mode=pl.Buffered(1)),    # bias/gamma/beta
            ],
            out_specs=pl.BlockSpec((tm_eff, E_pad), row_map),
        ),
        compiler_params=pltpu.CompilerParams(
            dimension_semantics=("parallel",),
            vmem_limit_bytes=vmem_limit,
        ),
        cost_estimate=cost,
    )(patches, w2d, pg)

    return out[:N, :E].reshape(B, n_patches, E)


def init_params(key, in_chans, embed_dim, patch_size):
    """Parameter shapes / init matching the PyTorch module.

    Conv2d default init ~ uniform(-1/sqrt(fan_in), 1/sqrt(fan_in)),
    LayerNorm: weight=1, bias=0.  Conv weight kept in (E, Cin, p, p) layout.
    """
    k1, k2 = jax.random.split(key)
    fan_in = in_chans * patch_size * patch_size
    lim = 1.0 / (fan_in ** 0.5)
    return {
        "w": jax.random.uniform(
            k1, (embed_dim, in_chans, patch_size, patch_size), jnp.float32, -lim, lim),
        "b": jax.random.uniform(k2, (embed_dim,), jnp.float32, -lim, lim),
        "gamma": jnp.ones((embed_dim,), jnp.float32),
        "beta": jnp.zeros((embed_dim,), jnp.float32),
    }


def reference_jax(x, params, patch_size):
    """Pure-JAX reference using a real strided conv (validates im2col too)."""
    y = jax.lax.conv_general_dilated(
        x, params["w"], (patch_size, patch_size), "VALID",
        dimension_numbers=("NCHW", "OIHW", "NCHW"),
        precision=jax.lax.Precision.HIGHEST)
    y = y + params["b"][None, :, None, None]
    B, E, Hp, Wp = y.shape
    y = y.reshape(B, E, Hp * Wp).transpose(0, 2, 1)           # (B, L, E)
    mu = jnp.mean(y, axis=-1, keepdims=True)
    var = jnp.mean((y - mu) ** 2, axis=-1, keepdims=True)
    return (y - mu) * jax.lax.rsqrt(var + LN_EPS) * params["gamma"] + params["beta"]


if __name__ == "__main__":
    # Small shapes consistent with the module defaults: patch_size=14,
    # in_chans=13, embed_dim=96; img_size=56 -> 4x4 = 16 patches, batch=2.
    patch_size, in_chans, embed_dim, img_size, batch = 14, 13, 96, 56, 2

    key = jax.random.PRNGKey(0)
    kx, kp = jax.random.split(key)
    x = jax.random.normal(kx, (batch, in_chans, img_size, img_size), jnp.float32)
    params = init_params(kp, in_chans, embed_dim, patch_size)

    ref = reference_jax(x, params, patch_size)
    n_patches = (img_size // patch_size) ** 2

    # Default fast path: bf16 patch/weight stream, f32 MXU accumulation.
    out = jax.block_until_ready(patch_embed(x, params, patch_size=patch_size))
    assert out.shape == (batch, n_patches, embed_dim)
    err_bf16 = float(jnp.max(jnp.abs(out - ref)))
    assert jnp.allclose(out, ref, atol=3e-2, rtol=3e-2), (
        f"bf16 path mismatch vs reference, max abs err {err_bf16}")

    # Exact-f32 path with tight tolerance to validate the fused kernel math.
    out32 = jax.block_until_ready(
        patch_embed(x, params, patch_size=patch_size, use_bf16=False))
    err_f32 = float(jnp.max(jnp.abs(out32 - ref)))
    assert jnp.allclose(out32, ref, atol=1e-3, rtol=1e-3), (
        f"f32 path mismatch vs reference, max abs err {err_f32}")

    print("KERNEL_OK")
</pallas_src>

<mosaic_0001>
module attributes {stable_mosaic.version = 11 : i64} {
  func.func @patch_embed_kernel(%arg0: i32, %arg1: memref<16x2548xbf16, #tpu.memory_space<vmem>>, %arg2: memref<2548x128xbf16, #tpu.memory_space<vmem>>, %arg3: memref<3x128xf32, #tpu.memory_space<vmem>>, %arg4: memref<16x128xf32, #tpu.memory_space<vmem>>) attributes {dimension_semantics = [#tpu.dimension_semantics<parallel>], iteration_bounds = array<i64: 2>, scalar_prefetch = 0 : i64, scratch_operands = 0 : i64, tpu.core_type = #tpu.core_type<tc>, window_params = [{transform_indices = @transform_0, window_bounds = array<i64: 16, 2548>}, {pipeline_mode = #tpu.pipeline_mode<synchronous>, transform_indices = @transform_1, window_bounds = array<i64: 2548, 128>}, {pipeline_mode = #tpu.pipeline_mode<synchronous>, transform_indices = @transform_2, window_bounds = array<i64: 3, 128>}, {transform_indices = @transform_3, window_bounds = array<i64: 16, 128>}]} {
    %c0 = arith.constant 0 : index
    %c0_0 = arith.constant 0 : index
    %0 = vector.load %arg1[%c0, %c0_0] : memref<16x2548xbf16, #tpu.memory_space<vmem>>, vector<16x2548xbf16>
    %c0_1 = arith.constant 0 : index
    %c0_2 = arith.constant 0 : index
    %1 = vector.load %arg2[%c0_1, %c0_2] : memref<2548x128xbf16, #tpu.memory_space<vmem>>, vector<2548x128xbf16>
    %cst = arith.constant dense<0.000000e+00> : vector<16x128xf32>
    %2 = tpu.matmul %0, %1, %cst {dimension_numbers = #tpu.dot_dimension_numbers<[1], [0], [0], [1], [0, 0, 1, 1], [], []>} : vector<16x2548xbf16>, vector<2548x128xbf16>, vector<16x128xf32> -> vector<16x128xf32>
    %c0_3 = arith.constant 0 : index
    %c0_4 = arith.constant 0 : index
    %3 = vector.load %arg3[%c0_3, %c0_4] : memref<3x128xf32, #tpu.memory_space<vmem>>, vector<3x128xf32>
    %4 = vector.extract_strided_slice %3 {offsets = [0, 0], sizes = [1, 128], strides = [1, 1]} : vector<3x128xf32> to vector<1x128xf32>
    %5 = vector.broadcast %4 : vector<1x128xf32> to vector<16x128xf32>
    %6 = arith.addf %2, %5 : vector<16x128xf32>
    %cst_5 = arith.constant dense<0.000000e+00> : vector<16xf32>
    %7 = vector.multi_reduction <add>, %6, %cst_5 [1] : vector<16x128xf32> to vector<16xf32>
    %8 = vector.shape_cast %7 : vector<16xf32> to vector<16x1xf32>
    %cst_6 = arith.constant 0.010416667 : f32
    %9 = vector.broadcast %cst_6 : f32 to vector<16x1xf32>
    %10 = arith.mulf %8, %9 : vector<16x1xf32>
    %11 = vector.broadcast %10 : vector<16x1xf32> to vector<16x128xf32>
    %12 = arith.subf %6, %11 : vector<16x128xf32>
    %13 = tpu.iota {dimensions = array<i32: 1>} : vector<1x128xi32>
    %c96_i32 = arith.constant 96 : i32
    %14 = vector.broadcast %c96_i32 : i32 to vector<1x128xi32>
    %15 = arith.cmpi slt, %13, %14 : vector<1x128xi32>
    %cst_7 = arith.constant 0.000000e+00 : f32
    %16 = vector.shape_cast %15 : vector<1x128xi1> to vector<1x128xi1>
    %17 = vector.broadcast %16 : vector<1x128xi1> to vector<16x128xi1>
    %18 = vector.broadcast %cst_7 : f32 to vector<16x128xf32>
    %19 = arith.select %17, %12, %18 : vector<16x128xi1>, vector<16x128xf32>
    %20 = arith.mulf %19, %19 : vector<16x128xf32>
    %cst_8 = arith.constant dense<0.000000e+00> : vector<16xf32>
    %21 = vector.multi_reduction <add>, %20, %cst_8 [1] : vector<16x128xf32> to vector<16xf32>
    %22 = vector.shape_cast %21 : vector<16xf32> to vector<16x1xf32>
    %cst_9 = arith.constant 0.010416667 : f32
    %23 = vector.broadcast %cst_9 : f32 to vector<16x1xf32>
    %24 = arith.mulf %22, %23 : vector<16x1xf32>
    %cst_10 = arith.constant 9.99999974E-6 : f32
    %25 = vector.broadcast %cst_10 : f32 to vector<16x1xf32>
    %26 = arith.addf %24, %25 : vector<16x1xf32>
    %27 = math.rsqrt %26 : vector<16x1xf32>
    %28 = vector.broadcast %27 : vector<16x1xf32> to vector<16x128xf32>
    %29 = arith.mulf %19, %28 : vector<16x128xf32>
    %30 = vector.extract_strided_slice %3 {offsets = [1, 0], sizes = [1, 128], strides = [1, 1]} : vector<3x128xf32> to vector<1x128xf32>
    %31 = vector.broadcast %30 : vector<1x128xf32> to vector<16x128xf32>
    %32 = arith.mulf %29, %31 : vector<16x128xf32>
    %33 = vector.extract_strided_slice %3 {offsets = [2, 0], sizes = [1, 128], strides = [1, 1]} : vector<3x128xf32> to vector<1x128xf32>
    %34 = vector.broadcast %33 : vector<1x128xf32> to vector<16x128xf32>
    %35 = arith.addf %32, %34 : vector<16x128xf32>
    %c0_11 = arith.constant 0 : index
    %c0_12 = arith.constant 0 : index
    %36 = vector.load %arg4[%c0_11, %c0_12] : memref<16x128xf32, #tpu.memory_space<vmem>>, vector<16x128xf32>
    tpu.vector_store %arg4[%c0_11, %c0_12], %35 {strides = array<i32>} : memref<16x128xf32, #tpu.memory_space<vmem>>, vector<16x128xf32>,
    return
  }
  func.func @transform_0(%arg0: i32) -> (i32, i32) {
    %c0_i32 = arith.constant 0 : i32
    %c0_i32_0 = arith.constant 0 : i32
    return %arg0, %c0_i32 : i32, i32
  }
  func.func @transform_1(%arg0: i32) -> (i32, i32) {
    %c0_i32 = arith.constant 0 : i32
    %c0_i32_0 = arith.constant 0 : i32
    %c0_i32_1 = arith.constant 0 : i32
    return %c0_i32, %c0_i32_0 : i32, i32
  }
  func.func @transform_2(%arg0: i32) -> (i32, i32) {
    %c0_i32 = arith.constant 0 : i32
    %c0_i32_0 = arith.constant 0 : i32
    %c0_i32_1 = arith.constant 0 : i32
    return %c0_i32, %c0_i32_0 : i32, i32
  }
  func.func @transform_3(%arg0: i32) -> (i32, i32) {
    %c0_i32 = arith.constant 0 : i32
    %c0_i32_0 = arith.constant 0 : i32
    return %arg0, %c0_i32 : i32, i32
  }
}

</mosaic_0001>

<llo_original>
// kernel: tpu_custom_call.1
$region0: #{tpu_custom_call.1}
  #allocation0 [shape = 'u32[]', space=smem, size = 0x4, offset = 0x4, fixed_abs, tag = 'smem constant byte address 0x4 - core index']
  #allocation1 [shape = 'u32[72,128]{1,0:T(1,128)}', space=vmem, size = 0x9000, scoped, tag = 'internal scratch']
  %s0 = inlined_call_operand.hbm [shape: bf16[32,2548], index: 0, kind: input, shape index: {}]
  %s1 = inlined_call_operand.hbm [shape: bf16[2548,128], index: 1, kind: input, shape index: {}]
  %s2 = inlined_call_operand.hbm [shape: f32[3,128], index: 2, kind: input, shape index: {}]
  %s3 = inlined_call_operand.hbm [shape: f32[32,128], index: 3, kind: output, shape index: {}]
  %s4 = sld [smem:[#allocation0]]
  $region57: #{tpu_custom_call.1} parent=0
    _
  %s6 = ssub.s32 1, %s4
  %s7 = scalar_select 0, %s6, %s4
  $region1: #{tpu_custom_call.1} parent=0
    #allocation2 [shape = 'u8[163840]{0}', space=vmem, size = 0x28000, scoped, tag = 'input window, operand 0']
    #allocation3 [shape = 's32[2]{0}', space=sflag, size = 0x8, scoped, tag = 'scoped memory for tpu_custom_call.1']
    #allocation4 [shape = 's32[2]{0}', space=sflag, size = 0x8, scoped, tag = 'scoped memory for tpu_custom_call.1']
    #allocation5 [shape = 'u8[653312]{0}', space=vmem, size = 0x9f800, scoped, tag = 'input window, operand 1, single buffered']
    #allocation6 [shape = 's32[1]{0}', space=sflag, size = 0x4, scoped, tag = 'scoped memory for tpu_custom_call.1']
    #allocation7 [shape = 'u8[2048]{0}', space=vmem, size = 0x800, scoped, tag = 'input window, operand 2, single buffered']
    #allocation8 [shape = 'u8[16384]{0}', space=vmem, size = 0x4000, scoped, tag = 'output window, operand 0']
    %8 = vsyncpa [#allocation3], 0
    %s9 = scalar_lea.sflag [#allocation3], 1
    %10 = vsyncpa %s9, 0
    %11 = vsyncpa [#allocation6], 0
    %12 = vsyncpa [#allocation4], 0
    %s13 = scalar_lea.sflag [#allocation4], 1
    %14 = vsyncpa %s13, 0
    loop: start=0, step=1, limit=4
    $region2: #{tpu_custom_call.1} parent=1 // loop_pre_header
      _
    $region3: #{tpu_custom_call.1} parent=1 // loop_header
      %s16 = sphi 0, %s20
      %p17 = scmp.ge.s32.totalorder %s16, 4
      %s26 = sphi 0, %s28
      %s29 = sphi 0, %s26
      %s30 = sphi 0, %s29
      %s46 = sphi 0, %s30
      %s50 = sphi 0, %s50
      %s52 = sphi 0, %s50
      %s53 = sphi 0, %s52
      %s67 = sphi 0, %s53
      %s71 = sphi 0, %s71
      %s73 = sphi 0, %s71
      %s74 = sphi 0, %s73
      %s88 = sphi 0, %s74
      %s94 = sphi 0, %s96
      %s97 = sphi 0, %s94
      %s98 = sphi 0, %s97
      %s114 = sphi 0, %s98
    $region4: #{tpu_custom_call.1} parent=1 // loop_header_branch
      %19 = sbr.rel (%p17) target = $region8
    $region5: #{tpu_custom_call.1} parent=1 // loop_body
      %s21 = ssub.s32 %s16, 1
      %s22 = ssub.s32 %s16, 2
      %s23 = sadd.s32 %s16, 1
      %s24 = ssub.s32 %s16, %s23
      %p25 = scmp.eq.s32.totalorder %s24, 0
      %s27 = sadd.s32 %s26, 1
      %s28 = scalar_select %p25, %s26, %s27
      %p31 = pneg %p25
      %p32 = scmp.eq.s32.totalorder %s16, 1
      %p33 = por %p31, %p32
      %p34 = scmp.ne.s32.totalorder %s26, %s29
      %p35 = scmp.eq.s32.totalorder %s16, 0
      %p36 = por %p34, %p35
      %p37 = scmp.ne.s32.totalorder %s26, %s29
      %p38 = scmp.eq.s32.totalorder %s21, 1
      %p39 = por %p37, %p38
      %p40 = scmp.ne.s32.totalorder %s29, %s30
      %p41 = scmp.eq.s32.totalorder %s21, 0
      %p42 = por %p40, %p41
      %p43 = scmp.ne.s32.totalorder %s29, %s30
      %p44 = scmp.eq.s32.totalorder %s22, 1
      %p45 = por %p43, %p44
      %p47 = scmp.ne.s32.totalorder %s30, %s46
      %p48 = scmp.eq.s32.totalorder %s22, 0
      %p49 = por %p47, %p48
      %s51 = sadd.s32 %s50, 1
      %p54 = scmp.eq.s32.totalorder %s16, 1
      %p55 = scmp.ne.s32.totalorder %s50, %s52
      %p56 = scmp.eq.s32.totalorder %s16, 0
      %p57 = por %p55, %p56
      %p58 = scmp.ne.s32.totalorder %s50, %s52
      %p59 = scmp.eq.s32.totalorder %s21, 1
      %p60 = por %p58, %p59
      %p61 = scmp.ne.s32.totalorder %s52, %s53
      %p62 = scmp.eq.s32.totalorder %s21, 0
      %p63 = por %p61, %p62
      %p64 = scmp.ne.s32.totalorder %s52, %s53
      %p65 = scmp.eq.s32.totalorder %s22, 1
      %p66 = por %p64, %p65
      %p68 = scmp.ne.s32.totalorder %s53, %s67
      %p69 = scmp.eq.s32.totalorder %s22, 0
      %p70 = por %p68, %p69
      %s72 = sadd.s32 %s71, 1
      %p75 = scmp.eq.s32.totalorder %s16, 1
      %p76 = scmp.ne.s32.totalorder %s71, %s73
      %p77 = scmp.eq.s32.totalorder %s16, 0
      %p78 = por %p76, %p77
      %p79 = scmp.ne.s32.totalorder %s71, %s73
      %p80 = scmp.eq.s32.totalorder %s21, 1
      %p81 = por %p79, %p80
      %p82 = scmp.ne.s32.totalorder %s73, %s74
      %p83 = scmp.eq.s32.totalorder %s21, 0
      %p84 = por %p82, %p83
      %p85 = scmp.ne.s32.totalorder %s73, %s74
      %p86 = scmp.eq.s32.totalorder %s22, 1
      %p87 = por %p85, %p86
      %p89 = scmp.ne.s32.totalorder %s74, %s88
      %p90 = scmp.eq.s32.totalorder %s22, 0
      %p91 = por %p89, %p90
      %s92 = ssub.s32 %s16, %s23
      %p93 = scmp.eq.s32.totalorder %s92, 0
      %s95 = sadd.s32 %s94, 1
      %s96 = scalar_select %p93, %s94, %s95
      %p99 = pneg %p93
      %p100 = scmp.eq.s32.totalorder %s16, 1
      %p101 = por %p99, %p100
      %p102 = scmp.ne.s32.totalorder %s94, %s97
      %p103 = scmp.eq.s32.totalorder %s16, 0
      %p104 = por %p102, %p103
      %p105 = scmp.ne.s32.totalorder %s94, %s97
      %p106 = scmp.eq.s32.totalorder %s21, 1
      %p107 = por %p105, %p106
      %p108 = scmp.ne.s32.totalorder %s97, %s98
      %p109 = scmp.eq.s32.totalorder %s21, 0
      %p110 = por %p108, %p109
      %p111 = scmp.ne.s32.totalorder %s97, %s98
      %p112 = scmp.eq.s32.totalorder %s22, 1
      %p113 = por %p111, %p112
      %p115 = scmp.ne.s32.totalorder %s98, %s114
      %p116 = scmp.eq.s32.totalorder %s22, 0
      %p117 = por %p115, %p116
      %p118 = scmp.le.s32.totalorder 1, %s16
      %p119 = scmp.lt.s32.totalorder %s16, 3
      %p120 = pnand %p118, %p119
      %p121 = pneg %p120
      // Predicated region
      $region9: #{tpu_custom_call.1} parent=5 // pred_check
        _
      $region10: #{tpu_custom_call.1} parent=5 // pred_check_branch
        %123 = sbr.rel (%p120) target = $region12
      $region11: #{tpu_custom_call.1} parent=5 // pred_region
        %s124 = ssub.s32 %s16, 1
        // Predicated region
        $region13: #{tpu_custom_call.1} parent=11 // pred_check
          %p125 = pneg %p63
        $region14: #{tpu_custom_call.1} parent=11 // pred_check_branch
          %127 = sbr.rel (%p125) target = $region16
        $region15: #{tpu_custom_call.1} parent=11 // pred_region
          %129 = vsyncadd [#allocation6], 0
          %s130 = sshll.u32 %s1, 4
          %s131 = int_to_ptr.hbm [resolvable:$true] %s130
          %s132 = sshll.u32 [#allocation5], 4
          %s133 = int_to_ptr.vmem [resolvable:$true] %s132
          %138 = dma.hbm_to_vmem [thread:$0]  %s131, 20416, %s133, [#allocation6], 64, 64, 4
        $region16: #{tpu_custom_call.1} parent=11 // pred_fallthru
          _
        // Predicated region
        $region17: #{tpu_custom_call.1} parent=11 // pred_check
          %p139 = pneg %p84
        $region18: #{tpu_custom_call.1} parent=11 // pred_check_branch
          %141 = sbr.rel (%p139) target = $region20
        $region19: #{tpu_custom_call.1} parent=11 // pred_region
          %143 = vsyncadd [#allocation6], 0
          %s145 = sshll.u32 %s2, 4
          %s146 = int_to_ptr.hbm [resolvable:$true] %s145
          %s147 = sshll.u32 [#allocation7], 4
          %s148 = int_to_ptr.vmem [resolvable:$true] %s147
          %150 = dma.hbm_to_vmem [thread:$0]  %s146, 64, %s148, [#allocation6]
        $region20: #{tpu_custom_call.1} parent=11 // pred_fallthru
          _
      $region12: #{tpu_custom_call.1} parent=5 // pred_fallthru
        _
      %p151 = scmp.lt.s32.totalorder %s16, 2
      // Predicated region
      $region21: #{tpu_custom_call.1} parent=5 // pred_check
        %p152 = pneg %p151
      $region22: #{tpu_custom_call.1} parent=5 // pred_check_branch
        %154 = sbr.rel (%p152) target = $region24
      $region23: #{tpu_custom_call.1} parent=5 // pred_region
        // Predicated region
        $region25: #{tpu_custom_call.1} parent=23 // pred_check
          %p155 = pneg %p36
        $region26: #{tpu_custom_call.1} parent=23 // pred_check_branch
          %157 = sbr.rel (%p155) target = $region28
        $region27: #{tpu_custom_call.1} parent=23 // pred_region
          %s158 = sand.u32 %s26, 1
          %s159 = scalar_lea.sflag [#allocation3], %s158
          %s160 = sand.u32 %s26, 1
          %s161 = smul.addr %s160, 160
          %s162 = scalar_lea.vmem [#allocation2], %s161
          %s163 = smul.u32 2, %s16
          %165 = vsyncadd %s159, 0
          %s166 = smul.addr %s163, 20
          %s167 = smul.addr %s166, 4
          %s168 = scalar_lea.hbm %s0, %s167
          %s169 = sshll.u32 %s168, 4
          %s170 = int_to_ptr.hbm [resolvable:$true] %s169
          %s171 = sshll.u32 %s162, 4
          %s172 = int_to_ptr.vmem [resolvable:$true] %s171
          %177 = dma.hbm_to_vmem [thread:$0]  %s170, 2560, %s172, %s159, 1280, 1280, 80
        $region28: #{tpu_custom_call.1} parent=23 // pred_fallthru
          _
      $region24: #{tpu_custom_call.1} parent=5 // pred_fallthru
        _
      %p178 = scmp.le.s32.totalorder 1, %s16
      %p179 = scmp.lt.s32.totalorder %s16, 3
      %p180 = pnand %p178, %p179
      %p181 = pneg %p180
      // Predicated region
      $region29: #{tpu_custom_call.1} parent=5 // pred_check
        _
      $region30: #{tpu_custom_call.1} parent=5 // pred_check_branch
        %183 = sbr.rel (%p180) target = $region32
      $region31: #{tpu_custom_call.1} parent=5 // pred_region
        %s184 = ssub.s32 %s16, 1
        %s185 = sand.u32 %s29, 1
        %s186 = scalar_lea.sflag [#allocation3], %s185
        %s187 = sand.u32 %s29, 1
        %s188 = smul.addr %s187, 160
        %s189 = scalar_lea.vmem [#allocation2], %s188
        // Predicated region
        $region33: #{tpu_custom_call.1} parent=31 // pred_check
          %p190 = pneg %p42
        $region34: #{tpu_custom_call.1} parent=31 // pred_check_branch
          %192 = sbr.rel (%p190) target = $region36
        $region35: #{tpu_custom_call.1} parent=31 // pred_region
          %194 = dma.done %s186, 2560
        $region36: #{tpu_custom_call.1} parent=31 // pred_fallthru
          _
        // Predicated region
        $region37: #{tpu_custom_call.1} parent=31 // pred_check
          %p195 = pneg %p63
        $region38: #{tpu_custom_call.1} parent=31 // pred_check_branch
          %197 = sbr.rel (%p195) target = $region40
        $region39: #{tpu_custom_call.1} parent=31 // pred_region
          %199 = dma.done [#allocation6], 20416
        $region40: #{tpu_custom_call.1} parent=31 // pred_fallthru
          _
        // Predicated region
        $region41: #{tpu_custom_call.1} parent=31 // pred_check
          %p200 = pneg %p84
        $region42: #{tpu_custom_call.1} parent=31 // pred_check_branch
          %202 = sbr.rel (%p200) target = $region44
        $region43: #{tpu_custom_call.1} parent=31 // pred_region
          %204 = dma.done [#allocation6], 64
        $region44: #{tpu_custom_call.1} parent=31 // pred_fallthru
          _
        %s205 = sand.u32 %s29, 1
        %s206 = scalar_lea.sflag [#allocation3], %s205
        %s207 = sand.u32 %s29, 1
        %s208 = smul.addr %s207, 160
        %s209 = scalar_lea.vmem [#allocation2], %s208
        %p210 = pneg %p42
        %p211 = pneg %p39
        %p212 = pneg %p63
        %p213 = pneg %p60
        %p214 = pneg %p84
        %p215 = pneg %p81
        %p216 = pneg %p110
        %p217 = pneg %p107
        %s218 = sand.u32 %s97, 1
        %s219 = scalar_lea.sflag [#allocation4], %s218
        %s220 = sand.u32 %s97, 1
        %s221 = smul.addr %s220, 16
        %s222 = scalar_lea.vmem [#allocation8], %s221
        %s223 = smul.u32 2, %s21
        %s224 = smul.u32 2, %s21
        %v225 = vld [vmem:[%s189] sm:$0xff]
        %v226 = vld [vmem:[%s189 + $0x8] sm:$0xff]
        %v227 = vld [vmem:[%s189 + $0x10] sm:$0xff]
        %v228 = vld [vmem:[%s189 + $0x18] sm:$0xff]
        %v229 = vld [vmem:[%s189 + $0x20] sm:$0xff]
        %v230 = vld [vmem:[%s189 + $0x28] sm:$0xff]
        %v231 = vld [vmem:[%s189 + $0x30] sm:$0xff]
        %v232 = vld [vmem:[%s189 + $0x38] sm:$0xff]
        %v233 = vld [vmem:[%s189 + $0x40] sm:$0xff]
        %v234 = vld [vmem:[%s189 + $0x48] sm:$0xff]
        %v235 = vld [vmem:[%s189 + $0x50] sm:$0xff]
        %v236 = vld [vmem:[%s189 + $0x58] sm:$0xff]
        %v237 = vld [vmem:[%s189 + $0x60] sm:$0xff]
        %v238 = vld [vmem:[%s189 + $0x68] sm:$0xff]
        %v239 = vld [vmem:[%s189 + $0x70] sm:$0xff]
        %v240 = vld [vmem:[%s189 + $0x78] sm:$0xff]
        %v241 = vld [vmem:[%s189 + $0x80] sm:$0xff]
        %v242 = vld [vmem:[%s189 + $0x88] sm:$0xff]
        %v243 = vld [vmem:[%s189 + $0x90] sm:$0xff]
        %v244 = vld [vmem:[%s189 + $0x98] sm:$0xff]
        %v245 = vld [vmem:[#allocation5] sm:$0xf]
        %v246 = vld [vmem:[#allocation5 + $0x4] sm:$0xf]
        %v247 = vld [vmem:[#allocation5 + $0x8] sm:$0xf]
        %v248 = vld [vmem:[#allocation5 + $0xc] sm:$0xf]
        %v249 = vld [vmem:[#allocation5 + $0x10] sm:$0xf]
        %v250 = vld [vmem:[#allocation5 + $0x14] sm:$0xf]
        %v251 = vld [vmem:[#allocation5 + $0x18] sm:$0xf]
        %v252 = vld [vmem:[#allocation5 + $0x1c] sm:$0xf]
        %v253 = vld [vmem:[#allocation5 + $0x20] sm:$0xf]
        %v254 = vld [vmem:[#allocation5 + $0x24] sm:$0xf]
        %v255 = vld [vmem:[#allocation5 + $0x28] sm:$0xf]
        %v256 = vld [vmem:[#allocation5 + $0x2c] sm:$0xf]
        %v257 = vld [vmem:[#allocation5 + $0x30] sm:$0xf]
        %v258 = vld [vmem:[#allocation5 + $0x34] sm:$0xf]
        %v259 = vld [vmem:[#allocation5 + $0x38] sm:$0xf]
        %v260 = vld [vmem:[#allocation5 + $0x3c] sm:$0xf]
        %v261 = vld [vmem:[#allocation5 + $0x40] sm:$0xf]
        %v262 = vld [vmem:[#allocation5 + $0x44] sm:$0xf]
        %v263 = vld [vmem:[#allocation5 + $0x48] sm:$0xf]
        %v264 = vld [vmem:[#allocation5 + $0x4c] sm:$0xf]
        %v265 = vld [vmem:[#allocation5 + $0x50] sm:$0xf]
        %v266 = vld [vmem:[#allocation5 + $0x54] sm:$0xf]
        %v267 = vld [vmem:[#allocation5 + $0x58] sm:$0xf]
        %v268 = vld [vmem:[#allocation5 + $0x5c] sm:$0xf]
        %v269 = vld [vmem:[#allocation5 + $0x60] sm:$0xf]
        %v270 = vld [vmem:[#allocation5 + $0x64] sm:$0xf]
        %v271 = vld [vmem:[#allocation5 + $0x68] sm:$0xf]
        %v272 = vld [vmem:[#allocation5 + $0x6c] sm:$0xf]
        %v273 = vld [vmem:[#allocation5 + $0x70] sm:$0xf]
        %v274 = vld [vmem:[#allocation5 + $0x74] sm:$0xf]
        %v275 = vld [vmem:[#allocation5 + $0x78] sm:$0xf]
        %v276 = vld [vmem:[#allocation5 + $0x7c] sm:$0xf]
        %v277 = vld [vmem:[#allocation5 + $0x80] sm:$0xf]
        %v278 = vld [vmem:[#allocation5 + $0x84] sm:$0xf]
        %v279 = vld [vmem:[#allocation5 + $0x88] sm:$0xf]
        %v280 = vld [vmem:[#allocation5 + $0x8c] sm:$0xf]
        %v281 = vld [vmem:[#allocation5 + $0x90] sm:$0xf]
        %v282 = vld [vmem:[#allocation5 + $0x94] sm:$0xf]
        %v283 = vld [vmem:[#allocation5 + $0x98] sm:$0xf]
        %v284 = vld [vmem:[#allocation5 + $0x9c] sm:$0xf]
        %v285 = vld [vmem:[#allocation5 + $0xa0] sm:$0xf]
        %v286 = vld [vmem:[#allocation5 + $0xa4] sm:$0xf]
        %v287 = vld [vmem:[#allocation5 + $0xa8] sm:$0xf]
        %v288 = vld [vmem:[#allocation5 + $0xac] sm:$0xf]
        %v289 = vld [vmem:[#allocation5 + $0xb0] sm:$0xf]
        %v290 = vld [vmem:[#allocation5 + $0xb4] sm:$0xf]
        %v291 = vld [vmem:[#allocation5 + $0xb8] sm:$0xf]
        %v292 = vld [vmem:[#allocation5 + $0xbc] sm:$0xf]
        %v293 = vld [vmem:[#allocation5 + $0xc0] sm:$0xf]
        %v294 = vld [vmem:[#allocation5 + $0xc4] sm:$0xf]
        %v295 = vld [vmem:[#allocation5 + $0xc8] sm:$0xf]
        %v296 = vld [vmem:[#allocation5 + $0xcc] sm:$0xf]
        %v297 = vld [vmem:[#allocation5 + $0xd0] sm:$0xf]
        %v298 = vld [vmem:[#allocation5 + $0xd4] sm:$0xf]
        %v299 = vld [vmem:[#allocation5 + $0xd8] sm:$0xf]
        %v300 = vld [vmem:[#allocation5 + $0xdc] sm:$0xf]
        %v301 = vld [vmem:[#allocation5 + $0xe0] sm:$0xf]
        %v302 = vld [vmem:[#allocation5 + $0xe4] sm:$0xf]
        %v303 = vld [vmem:[#allocation5 + $0xe8] sm:$0xf]
        %v304 = vld [vmem:[#allocation5 + $0xec] sm:$0xf]
        %v305 = vld [vmem:[#allocation5 + $0xf0] sm:$0xf]
        %v306 = vld [vmem:[#allocation5 + $0xf4] sm:$0xf]
        %v307 = vld [vmem:[#allocation5 + $0xf8] sm:$0xf]
        %v308 = vld [vmem:[#allocation5 + $0xfc] sm:$0xf]
        %v309 = vld [vmem:[#allocation5 + $0x100] sm:$0xf]
        %v310 = vld [vmem:[#allocation5 + $0x104] sm:$0xf]
        %v311 = vld [vmem:[#allocation5 + $0x108] sm:$0xf]
        %v312 = vld [vmem:[#allocation5 + $0x10c] sm:$0xf]
        %v313 = vld [vmem:[#allocation5 + $0x110] sm:$0xf]
        %v314 = vld [vmem:[#allocation5 + $0x114] sm:$0xf]
        %v315 = vld [vmem:[#allocation5 + $0x118] sm:$0xf]
        %v316 = vld [vmem:[#allocation5 + $0x11c] sm:$0xf]
        %v317 = vld [vmem:[#allocation5 + $0x120] sm:$0xf]
        %v318 = vld [vmem:[#allocation5 + $0x124] sm:$0xf]
        %v319 = vld [vmem:[#allocation5 + $0x128] sm:$0xf]
        %v320 = vld [vmem:[#allocation5 + $0x12c] sm:$0xf]
        %v321 = vld [vmem:[#allocation5 + $0x130] sm:$0xf]
        %v322 = vld [vmem:[#allocation5 + $0x134] sm:$0xf]
        %v323 = vld [vmem:[#allocation5 + $0x138] sm:$0xf]
        %v324 = vld [vmem:[#allocation5 + $0x13c] sm:$0xf]
        %v325 = vld [vmem:[#allocation5 + $0x140] sm:$0xf]
        %v326 = vld [vmem:[#allocation5 + $0x144] sm:$0xf]
        %v327 = vld [vmem:[#allocation5 + $0x148] sm:$0xf]
        %v328 = vld [vmem:[#allocation5 + $0x14c] sm:$0xf]
        %v329 = vld [vmem:[#allocation5 + $0x150] sm:$0xf]
        %v330 = vld [vmem:[#allocation5 + $0x154] sm:$0xf]
        %v331 = vld [vmem:[#allocation5 + $0x158] sm:$0xf]
        %v332 = vld [vmem:[#allocation5 + $0x15c] sm:$0xf]
        %v333 = vld [vmem:[#allocation5 + $0x160] sm:$0xf]
        %v334 = vld [vmem:[#allocation5 + $0x164] sm:$0xf]
        %v335 = vld [vmem:[#allocation5 + $0x168] sm:$0xf]
        %v336 = vld [vmem:[#allocation5 + $0x16c] sm:$0xf]
        %v337 = vld [vmem:[#allocation5 + $0x170] sm:$0xf]
        %v338 = vld [vmem:[#allocation5 + $0x174] sm:$0xf]
        %v339 = vld [vmem:[#allocation5 + $0x178] sm:$0xf]
        %v340 = vld [vmem:[#allocation5 + $0x17c] sm:$0xf]
        %v341 = vld [vmem:[#allocation5 + $0x180] sm:$0xf]
        %v342 = vld [vmem:[#allocation5 + $0x184] sm:$0xf]
        %v343 = vld [vmem:[#allocation5 + $0x188] sm:$0xf]
        %v344 = vld [vmem:[#allocation5 + $0x18c] sm:$0xf]
        %v345 = vld [vmem:[#allocation5 + $0x190] sm:$0xf]
        %v346 = vld [vmem:[#allocation5 + $0x194] sm:$0xf]
        %v347 = vld [vmem:[#allocation5 + $0x198] sm:$0xf]
        %v348 = vld [vmem:[#allocation5 + $0x19c] sm:$0xf]
        %v349 = vld [vmem:[#allocation5 + $0x1a0] sm:$0xf]
        %v350 = vld [vmem:[#allocation5 + $0x1a4] sm:$0xf]
        %v351 = vld [vmem:[#allocation5 + $0x1a8] sm:$0xf]
        %v352 = vld [vmem:[#allocation5 + $0x1ac] sm:$0xf]
        %v353 = vld [vmem:[#allocation5 + $0x1b0] sm:$0xf]
        %v354 = vld [vmem:[#allocation5 + $0x1b4] sm:$0xf]
        %v355 = vld [vmem:[#allocation5 + $0x1b8] sm:$0xf]
        %v356 = vld [vmem:[#allocation5 + $0x1bc] sm:$0xf]
        %v357 = vld [vmem:[#allocation5 + $0x1c0] sm:$0xf]
        %v358 = vld [vmem:[#allocation5 + $0x1c4] sm:$0xf]
        %v359 = vld [vmem:[#allocation5 + $0x1c8] sm:$0xf]
        %v360 = vld [vmem:[#allocation5 + $0x1cc] sm:$0xf]
        %v361 = vld [vmem:[#allocation5 + $0x1d0] sm:$0xf]
        %v362 = vld [vmem:[#allocation5 + $0x1d4] sm:$0xf]
        %v363 = vld [vmem:[#allocation5 + $0x1d8] sm:$0xf]
        %v364 = vld [vmem:[#allocation5 + $0x1dc] sm:$0xf]
        %v365 = vld [vmem:[#allocation5 + $0x1e0] sm:$0xf]
        %v366 = vld [vmem:[#allocation5 + $0x1e4] sm:$0xf]
        %v367 = vld [vmem:[#allocation5 + $0x1e8] sm:$0xf]
        %v368 = vld [vmem:[#allocation5 + $0x1ec] sm:$0xf]
        %v369 = vld [vmem:[#allocation5 + $0x1f0] sm:$0xf]
        %v370 = vld [vmem:[#allocation5 + $0x1f4] sm:$0xf]
        %v371 = vld [vmem:[#allocation5 + $0x1f8] sm:$0xf]
        %v372 = vld [vmem:[#allocation5 + $0x1fc] sm:$0xf]
        %v373 = vld [vmem:[#allocation5 + $0x200] sm:$0xf]
        %v374 = vld [vmem:[#allocation5 + $0x204] sm:$0xf]
        %v375 = vld [vmem:[#allocation5 + $0x208] sm:$0xf]
        %v376 = vld [vmem:[#allocation5 + $0x20c] sm:$0xf]
        %v377 = vld [vmem:[#allocation5 + $0x210] sm:$0xf]
        %v378 = vld [vmem:[#allocation5 + $0x214] sm:$0xf]
        %v379 = vld [vmem:[#allocation5 + $0x218] sm:$0xf]
        %v380 = vld [vmem:[#allocation5 + $0x21c] sm:$0xf]
        %v381 = vld [vmem:[#allocation5 + $0x220] sm:$0xf]
        %v382 = vld [vmem:[#allocation5 + $0x224] sm:$0xf]
        %v383 = vld [vmem:[#allocation5 + $0x228] sm:$0xf]
        %v384 = vld [vmem:[#allocation5 + $0x22c] sm:$0xf]
        %v385 = vld [vmem:[#allocation5 + $0x230] sm:$0xf]
        %v386 = vld [vmem:[#allocation5 + $0x234] sm:$0xf]
        %v387 = vld [vmem:[#allocation5 + $0x238] sm:$0xf]
        %v388 = vld [vmem:[#allocation5 + $0x23c] sm:$0xf]
        %v389 = vld [vmem:[#allocation5 + $0x240] sm:$0xf]
        %v390 = vld [vmem:[#allocation5 + $0x244] sm:$0xf]
        %v391 = vld [vmem:[#allocation5 + $0x248] sm:$0xf]
        %v392 = vld [vmem:[#allocation5 + $0x24c] sm:$0xf]
        %v393 = vld [vmem:[#allocation5 + $0x250] sm:$0xf]
        %v394 = vld [vmem:[#allocation5 + $0x254] sm:$0xf]
        %v395 = vld [vmem:[#allocation5 + $0x258] sm:$0xf]
        %v396 = vld [vmem:[#allocation5 + $0x25c] sm:$0xf]
        %v397 = vld [vmem:[#allocation5 + $0x260] sm:$0xf]
        %v398 = vld [vmem:[#allocation5 + $0x264] sm:$0xf]
        %v399 = vld [vmem:[#allocation5 + $0x268] sm:$0xf]
        %v400 = vld [vmem:[#allocation5 + $0x26c] sm:$0xf]
        %v401 = vld [vmem:[#allocation5 + $0x270] sm:$0xf]
        %v402 = vld [vmem:[#allocation5 + $0x274] sm:$0xf]
        %v403 = vld [vmem:[#allocation5 + $0x278] sm:$0xf]
        %v404 = vld [vmem:[#allocation5 + $0x27c] sm:$0xf]
        %v405 = vld [vmem:[#allocation5 + $0x280] sm:$0xf]
        %v406 = vld [vmem:[#allocation5 + $0x284] sm:$0xf]
        %v407 = vld [vmem:[#allocation5 + $0x288] sm:$0xf]
        %v408 = vld [vmem:[#allocation5 + $0x28c] sm:$0xf]
        %v409 = vld [vmem:[#allocation5 + $0x290] sm:$0xf]
        %v410 = vld [vmem:[#allocation5 + $0x294] sm:$0xf]
        %v411 = vld [vmem:[#allocation5 + $0x298] sm:$0xf]
        %v412 = vld [vmem:[#allocation5 + $0x29c] sm:$0xf]
        %v413 = vld [vmem:[#allocation5 + $0x2a0] sm:$0xf]
        %v414 = vld [vmem:[#allocation5 + $0x2a4] sm:$0xf]
        %v415 = vld [vmem:[#allocation5 + $0x2a8] sm:$0xf]
        %v416 = vld [vmem:[#allocation5 + $0x2ac] sm:$0xf]
        %v417 = vld [vmem:[#allocation5 + $0x2b0] sm:$0xf]
        %v418 = vld [vmem:[#allocation5 + $0x2b4] sm:$0xf]
        %v419 = vld [vmem:[#allocation5 + $0x2b8] sm:$0xf]
        %v420 = vld [vmem:[#allocation5 + $0x2bc] sm:$0xf]
        %v421 = vld [vmem:[#allocation5 + $0x2c0] sm:$0xf]
        %v422 = vld [vmem:[#allocation5 + $0x2c4] sm:$0xf]
        %v423 = vld [vmem:[#allocation5 + $0x2c8] sm:$0xf]
        %v424 = vld [vmem:[#allocation5 + $0x2cc] sm:$0xf]
        %v425 = vld [vmem:[#allocation5 + $0x2d0] sm:$0xf]
        %v426 = vld [vmem:[#allocation5 + $0x2d4] sm:$0xf]
        %v427 = vld [vmem:[#allocation5 + $0x2d8] sm:$0xf]
        %v428 = vld [vmem:[#allocation5 + $0x2dc] sm:$0xf]
        %v429 = vld [vmem:[#allocation5 + $0x2e0] sm:$0xf]
        %v430 = vld [vmem:[#allocation5 + $0x2e4] sm:$0xf]
        %v431 = vld [vmem:[#allocation5 + $0x2e8] sm:$0xf]
        %v432 = vld [vmem:[#allocation5 + $0x2ec] sm:$0xf]
        %v433 = vld [vmem:[#allocation5 + $0x2f0] sm:$0xf]
        %v434 = vld [vmem:[#allocation5 + $0x2f4] sm:$0xf]
        %v435 = vld [vmem:[#allocation5 + $0x2f8] sm:$0xf]
        %v436 = vld [vmem:[#allocation5 + $0x2fc] sm:$0xf]
        %v437 = vld [vmem:[#allocation5 + $0x300] sm:$0xf]
        %v438 = vld [vmem:[#allocation5 + $0x304] sm:$0xf]
        %v439 = vld [vmem:[#allocation5 + $0x308] sm:$0xf]
        %v440 = vld [vmem:[#allocation5 + $0x30c] sm:$0xf]
        %v441 = vld [vmem:[#allocation5 + $0x310] sm:$0xf]
        %v442 = vld [vmem:[#allocation5 + $0x314] sm:$0xf]
        %v443 = vld [vmem:[#allocation5 + $0x318] sm:$0xf]
        %v444 = vld [vmem:[#allocation5 + $0x31c] sm:$0xf]
        %v445 = vld [vmem:[#allocation5 + $0x320] sm:$0xf]
        %v446 = vld [vmem:[#allocation5 + $0x324] sm:$0xf]
        %v447 = vld [vmem:[#allocation5 + $0x328] sm:$0xf]
        %v448 = vld [vmem:[#allocation5 + $0x32c] sm:$0xf]
        %v449 = vld [vmem:[#allocation5 + $0x330] sm:$0xf]
        %v450 = vld [vmem:[#allocation5 + $0x334] sm:$0xf]
        %v451 = vld [vmem:[#allocation5 + $0x338] sm:$0xf]
        %v452 = vld [vmem:[#allocation5 + $0x33c] sm:$0xf]
        %v453 = vld [vmem:[#allocation5 + $0x340] sm:$0xf]
        %v454 = vld [vmem:[#allocation5 + $0x344] sm:$0xf]
        %v455 = vld [vmem:[#allocation5 + $0x348] sm:$0xf]
        %v456 = vld [vmem:[#allocation5 + $0x34c] sm:$0xf]
        %v457 = vld [vmem:[#allocation5 + $0x350] sm:$0xf]
        %v458 = vld [vmem:[#allocation5 + $0x354] sm:$0xf]
        %v459 = vld [vmem:[#allocation5 + $0x358] sm:$0xf]
        %v460 = vld [vmem:[#allocation5 + $0x35c] sm:$0xf]
        %v461 = vld [vmem:[#allocation5 + $0x360] sm:$0xf]
        %v462 = vld [vmem:[#allocation5 + $0x364] sm:$0xf]
        %v463 = vld [vmem:[#allocation5 + $0x368] sm:$0xf]
        %v464 = vld [vmem:[#allocation5 + $0x36c] sm:$0xf]
        %v465 = vld [vmem:[#allocation5 + $0x370] sm:$0xf]
        %v466 = vld [vmem:[#allocation5 + $0x374] sm:$0xf]
        %v467 = vld [vmem:[#allocation5 + $0x378] sm:$0xf]
        %v468 = vld [vmem:[#allocation5 + $0x37c] sm:$0xf]
        %v469 = vld [vmem:[#allocation5 + $0x380] sm:$0xf]
        %v470 = vld [vmem:[#allocation5 + $0x384] sm:$0xf]
        %v471 = vld [vmem:[#allocation5 + $0x388] sm:$0xf]
        %v472 = vld [vmem:[#allocation5 + $0x38c] sm:$0xf]
        %v473 = vld [vmem:[#allocation5 + $0x390] sm:$0xf]
        %v474 = vld [vmem:[#allocation5 + $0x394] sm:$0xf]
        %v475 = vld [vmem:[#allocation5 + $0x398] sm:$0xf]
        %v476 = vld [vmem:[#allocation5 + $0x39c] sm:$0xf]
        %v477 = vld [vmem:[#allocation5 + $0x3a0] sm:$0xf]
        %v478 = vld [vmem:[#allocation5 + $0x3a4] sm:$0xf]
        %v479 = vld [vmem:[#allocation5 + $0x3a8] sm:$0xf]
        %v480 = vld [vmem:[#allocation5 + $0x3ac] sm:$0xf]
        %v481 = vld [vmem:[#allocation5 + $0x3b0] sm:$0xf]
        %v482 = vld [vmem:[#allocation5 + $0x3b4] sm:$0xf]
        %v483 = vld [vmem:[#allocation5 + $0x3b8] sm:$0xf]
        %v484 = vld [vmem:[#allocation5 + $0x3bc] sm:$0xf]
        %v485 = vld [vmem:[#allocation5 + $0x3c0] sm:$0xf]
        %v486 = vld [vmem:[#allocation5 + $0x3c4] sm:$0xf]
        %v487 = vld [vmem:[#allocation5 + $0x3c8] sm:$0xf]
        %v488 = vld [vmem:[#allocation5 + $0x3cc] sm:$0xf]
        %v489 = vld [vmem:[#allocation5 + $0x3d0] sm:$0xf]
        %v490 = vld [vmem:[#allocation5 + $0x3d4] sm:$0xf]
        %v491 = vld [vmem:[#allocation5 + $0x3d8] sm:$0xf]
        %v492 = vld [vmem:[#allocation5 + $0x3dc] sm:$0xf]
        %v493 = vld [vmem:[#allocation5 + $0x3e0] sm:$0xf]
        %v494 = vld [vmem:[#allocation5 + $0x3e4] sm:$0xf]
        %v495 = vld [vmem:[#allocation5 + $0x3e8] sm:$0xf]
        %v496 = vld [vmem:[#allocation5 + $0x3ec] sm:$0xf]
        %v497 = vld [vmem:[#allocation5 + $0x3f0] sm:$0xf]
        %v498 = vld [vmem:[#allocation5 + $0x3f4] sm:$0xf]
        %v499 = vld [vmem:[#allocation5 + $0x3f8] sm:$0xf]
        %v500 = vld [vmem:[#allocation5 + $0x3fc] sm:$0xf]
        %v501 = vld [vmem:[#allocation5 + $0x400] sm:$0xf]
        %v502 = vld [vmem:[#allocation5 + $0x404] sm:$0xf]
        %v503 = vld [vmem:[#allocation5 + $0x408] sm:$0xf]
        %v504 = vld [vmem:[#allocation5 + $0x40c] sm:$0xf]
        %v505 = vld [vmem:[#allocation5 + $0x410] sm:$0xf]
        %v506 = vld [vmem:[#allocation5 + $0x414] sm:$0xf]
        %v507 = vld [vmem:[#allocation5 + $0x418] sm:$0xf]
        %v508 = vld [vmem:[#allocation5 + $0x41c] sm:$0xf]
        %v509 = vld [vmem:[#allocation5 + $0x420] sm:$0xf]
        %v510 = vld [vmem:[#allocation5 + $0x424] sm:$0xf]
        %v511 = vld [vmem:[#allocation5 + $0x428] sm:$0xf]
        %v512 = vld [vmem:[#allocation5 + $0x42c] sm:$0xf]
        %v513 = vld [vmem:[#allocation5 + $0x430] sm:$0xf]
        %v514 = vld [vmem:[#allocation5 + $0x434] sm:$0xf]
        %v515 = vld [vmem:[#allocation5 + $0x438] sm:$0xf]
        %v516 = vld [vmem:[#allocation5 + $0x43c] sm:$0xf]
        %v517 = vld [vmem:[#allocation5 + $0x440] sm:$0xf]
        %v518 = vld [vmem:[#allocation5 + $0x444] sm:$0xf]
        %v519 = vld [vmem:[#allocation5 + $0x448] sm:$0xf]
        %v520 = vld [vmem:[#allocation5 + $0x44c] sm:$0xf]
        %v521 = vld [vmem:[#allocation5 + $0x450] sm:$0xf]
        %v522 = vld [vmem:[#allocation5 + $0x454] sm:$0xf]
        %v523 = vld [vmem:[#allocation5 + $0x458] sm:$0xf]
        %v524 = vld [vmem:[#allocation5 + $0x45c] sm:$0xf]
        %v525 = vld [vmem:[#allocation5 + $0x460] sm:$0xf]
        %v526 = vld [vmem:[#allocation5 + $0x464] sm:$0xf]
        %v527 = vld [vmem:[#allocation5 + $0x468] sm:$0xf]
        %v528 = vld [vmem:[#allocation5 + $0x46c] sm:$0xf]
        %v529 = vld [vmem:[#allocation5 + $0x470] sm:$0xf]
        %v530 = vld [vmem:[#allocation5 + $0x474] sm:$0xf]
        %v531 = vld [vmem:[#allocation5 + $0x478] sm:$0xf]
        %v532 = vld [vmem:[#allocation5 + $0x47c] sm:$0xf]
        %v533 = vld [vmem:[#allocation5 + $0x480] sm:$0xf]
        %v534 = vld [vmem:[#allocation5 + $0x484] sm:$0xf]
        %v535 = vld [vmem:[#allocation5 + $0x488] sm:$0xf]
        %v536 = vld [vmem:[#allocation5 + $0x48c] sm:$0xf]
        %v537 = vld [vmem:[#allocation5 + $0x490] sm:$0xf]
        %v538 = vld [vmem:[#allocation5 + $0x494] sm:$0xf]
        %v539 = vld [vmem:[#allocation5 + $0x498] sm:$0xf]
        %v540 = vld [vmem:[#allocation5 + $0x49c] sm:$0xf]
        %v541 = vld [vmem:[#allocation5 + $0x4a0] sm:$0xf]
        %v542 = vld [vmem:[#allocation5 + $0x4a4] sm:$0xf]
        %v543 = vld [vmem:[#allocation5 + $0x4a8] sm:$0xf]
        %v544 = vld [vmem:[#allocation5 + $0x4ac] sm:$0xf]
        %v545 = vld [vmem:[#allocation5 + $0x4b0] sm:$0xf]
        %v546 = vld [vmem:[#allocation5 + $0x4b4] sm:$0xf]
        %v547 = vld [vmem:[#allocation5 + $0x4b8] sm:$0xf]
        %v548 = vld [vmem:[#allocation5 + $0x4bc] sm:$0xf]
        %v549 = vld [vmem:[#allocation5 + $0x4c0] sm:$0xf]
        %v550 = vld [vmem:[#allocation5 + $0x4c4] sm:$0xf]
        %v551 = vld [vmem:[#allocation5 + $0x4c8] sm:$0xf]
        %v552 = vld [vmem:[#allocation5 + $0x4cc] sm:$0xf]
        %v553 = vld [vmem:[#allocation5 + $0x4d0] sm:$0xf]
        %v554 = vld [vmem:[#allocation5 + $0x4d4] sm:$0xf]
        %v555 = vld [vmem:[#allocation5 + $0x4d8] sm:$0xf]
        %v556 = vld [vmem:[#allocation5 + $0x4dc] sm:$0xf]
        %v557 = vld [vmem:[#allocation5 + $0x4e0] sm:$0xf]
        %v558 = vld [vmem:[#allocation5 + $0x4e4] sm:$0xf]
        %v559 = vld [vmem:[#allocation5 + $0x4e8] sm:$0xf]
        %v560 = vld [vmem:[#allocation5 + $0x4ec] sm:$0xf]
        %v561 = vld [vmem:[#allocation5 + $0x4f0] sm:$0xf]
        %v562 = vld [vmem:[#allocation5 + $0x4f4] sm:$0xf]
        %v563 = vld [vmem:[#allocation5 + $0x4f8] sm:$0x3]
        %v564 = vld [vmem:[#allocation7] sm:$0x7]
        %v565 = vperm.slane %v564, 0
        %v586 = vunpack.c.l.b16 %v225
        %v587 = vunpack.c.h.b16 %v225
        %v588 = vunpack.c.l.b16 %v226
        %v589 = vunpack.c.h.b16 %v226
        %v590 = vunpack.c.l.b16 %v227
        %v591 = vunpack.c.h.b16 %v227
        %v592 = vunpack.c.l.b16 %v228
        %v593 = vunpack.c.h.b16 %v228
        %v594 = vunpack.c.l.b16 %v229
        %v595 = vunpack.c.h.b16 %v229
        %v596 = vunpack.c.l.b16 %v230
        %v597 = vunpack.c.h.b16 %v230
        %v598 = vunpack.c.l.b16 %v231
        %v599 = vunpack.c.h.b16 %v231
        %v600 = vunpack.c.l.b16 %v232
        %v601 = vunpack.c.h.b16 %v232
        %v602 = vunpack.c.l.b16 %v233
        %v603 = vunpack.c.h.b16 %v233
        %v604 = vunpack.c.l.b16 %v234
        %v605 = vunpack.c.h.b16 %v234
        %v606 = vunpack.c.l.b16 %v235
        %v607 = vunpack.c.h.b16 %v235
        %v608 = vunpack.c.l.b16 %v236
        %v609 = vunpack.c.h.b16 %v236
        %v610 = vunpack.c.l.b16 %v237
        %v611 = vunpack.c.h.b16 %v237
        %v612 = vunpack.c.l.b16 %v238
        %v613 = vunpack.c.h.b16 %v238
        %v614 = vunpack.c.l.b16 %v239
        %v615 = vunpack.c.h.b16 %v239
        %v616 = vunpack.c.l.b16 %v240
        %v617 = vunpack.c.h.b16 %v240
        %v618 = vunpack.c.l.b16 %v241
        %v619 = vunpack.c.h.b16 %v241
        %v620 = vunpack.c.l.b16 %v242
        %v621 = vunpack.c.h.b16 %v242
        %v622 = vunpack.c.l.b16 %v243
        %v623 = vunpack.c.h.b16 %v243
        %v624 = vunpack.c.l.b16 %v244
        %v625 = vunpack.c.h.b16 %v244
        %v626 = vpack.c.b16 %v606, %v586
        %v627 = vpack.c.b16 %v607, %v587
        %v628 = vpack.c.b16 %v608, %v588
        %v629 = vpack.c.b16 %v609, %v589
        %v630 = vpack.c.b16 %v610, %v590
        %v631 = vpack.c.b16 %v611, %v591
        %v632 = vpack.c.b16 %v612, %v592
        %v633 = vpack.c.b16 %v613, %v593
        %v634 = vpack.c.b16 %v614, %v594
        %v635 = vpack.c.b16 %v615, %v595
        %v636 = vpack.c.b16 %v616, %v596
        %v637 = vpack.c.b16 %v617, %v597
        %v638 = vpack.c.b16 %v618, %v598
        %v639 = vpack.c.b16 %v619, %v599
        %v640 = vpack.c.b16 %v620, %v600
        %v641 = vpack.c.b16 %v621, %v601
        %v642 = vpack.c.b16 %v622, %v602
        %v643 = vpack.c.b16 %v623, %v603
        %v644 = vpack.c.b16 %v624, %v604
        %v645 = vpack.c.b16 %v625, %v605
        %v984 = vunpack.c.l.b16 %v245
        %v985 = vunpack.c.l.b16 %v246
        %v986 = vunpack.c.l.b16 %v247
        %v987 = vunpack.c.l.b16 %v248
        %v988 = vunpack.c.l.b16 %v249
        %v989 = vunpack.c.l.b16 %v250
        %v990 = vunpack.c.l.b16 %v251
        %v991 = vunpack.c.l.b16 %v252
        %v992 = vunpack.c.l.b16 %v253
        %v993 = vunpack.c.l.b16 %v254
        %v994 = vunpack.c.l.b16 %v255
        %v995 = vunpack.c.l.b16 %v256
        %v996 = vunpack.c.l.b16 %v257
        %v997 = vunpack.c.l.b16 %v258
        %v998 = vunpack.c.l.b16 %v259
        %v999 = vunpack.c.l.b16 %v260
        %v1000 = vunpack.c.l.b16 %v261
        %v1001 = vunpack.c.l.b16 %v262
        %v1002 = vunpack.c.l.b16 %v263
        %v1003 = vunpack.c.l.b16 %v264
        %v1004 = vunpack.c.l.b16 %v265
        %v1005 = vunpack.c.l.b16 %v266
        %v1006 = vunpack.c.l.b16 %v267
        %v1007 = vunpack.c.l.b16 %v268
        %v1008 = vunpack.c.l.b16 %v269
        %v1009 = vunpack.c.l.b16 %v270
        %v1010 = vunpack.c.l.b16 %v271
        %v1011 = vunpack.c.l.b16 %v272
        %v1012 = vunpack.c.l.b16 %v273
        %v1013 = vunpack.c.l.b16 %v274
        %v1014 = vunpack.c.l.b16 %v275
        %v1015 = vunpack.c.l.b16 %v276
        %v1016 = vunpack.c.l.b16 %v277
        %v1017 = vunpack.c.l.b16 %v278
        %v1018 = vunpack.c.l.b16 %v279
        %v1019 = vunpack.c.l.b16 %v280
        %v1020 = vunpack.c.l.b16 %v281
        %v1021 = vunpack.c.l.b16 %v282
        %v1022 = vunpack.c.l.b16 %v283
        %v1023 = vunpack.c.l.b16 %v284
        %v1024 = vunpack.c.l.b16 %v285
        %v1025 = vunpack.c.l.b16 %v286
        %v1026 = vunpack.c.l.b16 %v287
        %v1027 = vunpack.c.l.b16 %v288
        %v1028 = vunpack.c.l.b16 %v289
        %v1029 = vunpack.c.l.b16 %v290
        %v1030 = vunpack.c.l.b16 %v291
        %v1031 = vunpack.c.l.b16 %v292
        %v1032 = vunpack.c.l.b16 %v293
        %v1033 = vunpack.c.l.b16 %v294
        %v1034 = vunpack.c.l.b16 %v295
        %v1035 = vunpack.c.l.b16 %v296
        %v1036 = vunpack.c.l.b16 %v297
        %v1037 = vunpack.c.l.b16 %v298
        %v1038 = vunpack.c.l.b16 %v299
        %v1039 = vunpack.c.l.b16 %v300
        %v1040 = vunpack.c.l.b16 %v301
        %v1041 = vunpack.c.l.b16 %v302
        %v1042 = vunpack.c.l.b16 %v303
        %v1043 = vunpack.c.l.b16 %v304
        %v1044 = vunpack.c.l.b16 %v305
        %v1045 = vunpack.c.l.b16 %v306
        %v1046 = vunpack.c.l.b16 %v307
        %v1047 = vunpack.c.l.b16 %v308
        %v1048 = vunpack.c.l.b16 %v309
        %v1049 = vunpack.c.l.b16 %v310
        %v1050 = vunpack.c.l.b16 %v311
        %v1051 = vunpack.c.l.b16 %v312
        %v1052 = vunpack.c.l.b16 %v313
        %v1053 = vunpack.c.l.b16 %v314
        %v1054 = vunpack.c.l.b16 %v315
        %v1055 = vunpack.c.l.b16 %v316
        %v1056 = vunpack.c.l.b16 %v317
        %v1057 = vunpack.c.l.b16 %v318
        %v1058 = vunpack.c.l.b16 %v319
        %v1059 = vunpack.c.l.b16 %v320
        %v1060 = vunpack.c.l.b16 %v321
        %v1061 = vunpack.c.l.b16 %v322
        %v1062 = vunpack.c.l.b16 %v323
        %v1063 = vunpack.c.l.b16 %v324
        %v1064 = vunpack.c.l.b16 %v325
        %v1065 = vunpack.c.l.b16 %v326
        %v1066 = vunpack.c.l.b16 %v327
        %v1067 = vunpack.c.l.b16 %v328
        %v1068 = vunpack.c.l.b16 %v329
        %v1069 = vunpack.c.l.b16 %v330
        %v1070 = vunpack.c.l.b16 %v331
        %v1071 = vunpack.c.l.b16 %v332
        %v1072 = vunpack.c.l.b16 %v333
        %v1073 = vunpack.c.l.b16 %v334
        %v1074 = vunpack.c.l.b16 %v335
        %v1075 = vunpack.c.l.b16 %v336
        %v1076 = vunpack.c.l.b16 %v337
        %v1077 = vunpack.c.l.b16 %v338
        %v1078 = vunpack.c.l.b16 %v339
        %v1079 = vunpack.c.l.b16 %v340
        %v1080 = vunpack.c.l.b16 %v341
        %v1081 = vunpack.c.l.b16 %v342
        %v1082 = vunpack.c.l.b16 %v343
        %v1083 = vunpack.c.l.b16 %v344
        %v1084 = vunpack.c.l.b16 %v345
        %v1085 = vunpack.c.l.b16 %v346
        %v1086 = vunpack.c.l.b16 %v347
        %v1087 = vunpack.c.l.b16 %v348
        %v1088 = vunpack.c.l.b16 %v349
        %v1089 = vunpack.c.l.b16 %v350
        %v1090 = vunpack.c.l.b16 %v351
        %v1091 = vunpack.c.l.b16 %v352
        %v1092 = vunpack.c.l.b16 %v353
        %v1093 = vunpack.c.l.b16 %v354
        %v1094 = vunpack.c.l.b16 %v355
        %v1095 = vunpack.c.l.b16 %v356
        %v1096 = vunpack.c.l.b16 %v357
        %v1097 = vunpack.c.l.b16 %v358
        %v1098 = vunpack.c.l.b16 %v359
        %v1099 = vunpack.c.l.b16 %v360
        %v1100 = vunpack.c.l.b16 %v361
        %v1101 = vunpack.c.l.b16 %v362
        %v1102 = vunpack.c.l.b16 %v363
        %v1103 = vunpack.c.l.b16 %v364
        %v1104 = vunpack.c.l.b16 %v365
        %v1105 = vunpack.c.l.b16 %v366
        %v1106 = vunpack.c.l.b16 %v367
        %v1107 = vunpack.c.l.b16 %v368
        %v1108 = vunpack.c.l.b16 %v369
        %v1109 = vunpack.c.l.b16 %v370
        %v1110 = vunpack.c.l.b16 %v371
        %v1111 = vunpack.c.l.b16 %v372
        %v1112 = vunpack.c.l.b16 %v373
        %v1113 = vunpack.c.l.b16 %v374
        %v1114 = vunpack.c.l.b16 %v375
        %v1115 = vunpack.c.l.b16 %v376
        %v1116 = vunpack.c.l.b16 %v377
        %v1117 = vunpack.c.l.b16 %v378
        %v1118 = vunpack.c.l.b16 %v379
        %v1119 = vunpack.c.l.b16 %v380
        %v1120 = vunpack.c.l.b16 %v381
        %v1121 = vunpack.c.l.b16 %v382
        %v1122 = vunpack.c.l.b16 %v383
        %v1123 = vunpack.c.l.b16 %v384
        %v1124 = vunpack.c.l.b16 %v385
        %v1125 = vunpack.c.l.b16 %v386
        %v1126 = vunpack.c.l.b16 %v387
        %v1127 = vunpack.c.l.b16 %v388
        %v1128 = vunpack.c.l.b16 %v389
        %v1129 = vunpack.c.l.b16 %v390
        %v1130 = vunpack.c.l.b16 %v391
        %v1131 = vunpack.c.l.b16 %v392
        %v1132 = vunpack.c.l.b16 %v393
        %v1133 = vunpack.c.l.b16 %v394
        %v1134 = vunpack.c.l.b16 %v395
        %v1135 = vunpack.c.l.b16 %v396
        %v1136 = vunpack.c.l.b16 %v397
        %v1137 = vunpack.c.l.b16 %v398
        %v1138 = vunpack.c.l.b16 %v399
        %v1139 = vunpack.c.l.b16 %v400
        %v1140 = vunpack.c.l.b16 %v401
        %v1141 = vunpack.c.l.b16 %v402
        %v1142 = vunpack.c.l.b16 %v403
        %v1143 = vunpack.c.l.b16 %v404
        %v1144 = vunpack.c.l.b16 %v405
        %v1145 = vunpack.c.l.b16 %v406
        %v1146 = vunpack.c.l.b16 %v407
        %v1147 = vunpack.c.l.b16 %v408
        %v1148 = vunpack.c.l.b16 %v409
        %v1149 = vunpack.c.l.b16 %v410
        %v1150 = vunpack.c.l.b16 %v411
        %v1151 = vunpack.c.l.b16 %v412
        %v1152 = vunpack.c.l.b16 %v413
        %v1153 = vunpack.c.l.b16 %v414
        %v1154 = vunpack.c.l.b16 %v415
        %v1155 = vunpack.c.l.b16 %v416
        %v1156 = vunpack.c.l.b16 %v417
        %v1157 = vunpack.c.l.b16 %v418
        %v1158 = vunpack.c.l.b16 %v419
        %v1159 = vunpack.c.l.b16 %v420
        %v1160 = vunpack.c.l.b16 %v421
        %v1161 = vunpack.c.l.b16 %v422
        %v1162 = vunpack.c.l.b16 %v423
        %v1163 = vunpack.c.l.b16 %v424
        %v1164 = vunpack.c.l.b16 %v425
        %v1165 = vunpack.c.l.b16 %v426
        %v1166 = vunpack.c.l.b16 %v427
        %v1167 = vunpack.c.l.b16 %v428
        %v1168 = vunpack.c.l.b16 %v429
        %v1169 = vunpack.c.l.b16 %v430
        %v1170 = vunpack.c.l.b16 %v431
        %v1171 = vunpack.c.l.b16 %v432
        %v1172 = vunpack.c.l.b16 %v433
        %v1173 = vunpack.c.l.b16 %v434
        %v1174 = vunpack.c.l.b16 %v435
        %v1175 = vunpack.c.l.b16 %v436
        %v1176 = vunpack.c.l.b16 %v437
        %v1177 = vunpack.c.l.b16 %v438
        %v1178 = vunpack.c.l.b16 %v439
        %v1179 = vunpack.c.l.b16 %v440
        %v1180 = vunpack.c.l.b16 %v441
        %v1181 = vunpack.c.l.b16 %v442
        %v1182 = vunpack.c.l.b16 %v443
        %v1183 = vunpack.c.l.b16 %v444
        %v1184 = vunpack.c.l.b16 %v445
        %v1185 = vunpack.c.l.b16 %v446
        %v1186 = vunpack.c.l.b16 %v447
        %v1187 = vunpack.c.l.b16 %v448
        %v1188 = vunpack.c.l.b16 %v449
        %v1189 = vunpack.c.l.b16 %v450
        %v1190 = vunpack.c.l.b16 %v451
        %v1191 = vunpack.c.l.b16 %v452
        %v1192 = vunpack.c.l.b16 %v453
        %v1193 = vunpack.c.l.b16 %v454
        %v1194 = vunpack.c.l.b16 %v455
        %v1195 = vunpack.c.l.b16 %v456
        %v1196 = vunpack.c.l.b16 %v457
        %v1197 = vunpack.c.l.b16 %v458
        %v1198 = vunpack.c.l.b16 %v459
        %v1199 = vunpack.c.l.b16 %v460
        %v1200 = vunpack.c.l.b16 %v461
        %v1201 = vunpack.c.l.b16 %v462
        %v1202 = vunpack.c.l.b16 %v463
        %v1203 = vunpack.c.l.b16 %v464
        %v1204 = vunpack.c.l.b16 %v465
        %v1205 = vunpack.c.l.b16 %v466
        %v1206 = vunpack.c.l.b16 %v467
        %v1207 = vunpack.c.l.b16 %v468
        %v1208 = vunpack.c.l.b16 %v469
        %v1209 = vunpack.c.l.b16 %v470
        %v1210 = vunpack.c.l.b16 %v471
        %v1211 = vunpack.c.l.b16 %v472
        %v1212 = vunpack.c.l.b16 %v473
        %v1213 = vunpack.c.l.b16 %v474
        %v1214 = vunpack.c.l.b16 %v475
        %v1215 = vunpack.c.l.b16 %v476
        %v1216 = vunpack.c.l.b16 %v477
        %v1217 = vunpack.c.l.b16 %v478
        %v1218 = vunpack.c.l.b16 %v479
        %v1219 = vunpack.c.l.b16 %v480
        %v1220 = vunpack.c.l.b16 %v481
        %v1221 = vunpack.c.l.b16 %v482
        %v1222 = vunpack.c.l.b16 %v483
        %v1223 = vunpack.c.l.b16 %v484
        %v1224 = vunpack.c.l.b16 %v485
        %v1225 = vunpack.c.l.b16 %v486
        %v1226 = vunpack.c.l.b16 %v487
        %v1227 = vunpack.c.l.b16 %v488
        %v1228 = vunpack.c.l.b16 %v489
        %v1229 = vunpack.c.l.b16 %v490
        %v1230 = vunpack.c.l.b16 %v491
        %v1231 = vunpack.c.l.b16 %v492
        %v1232 = vunpack.c.l.b16 %v493
        %v1233 = vunpack.c.l.b16 %v494
        %v1234 = vunpack.c.l.b16 %v495
        %v1235 = vunpack.c.l.b16 %v496
        %v1236 = vunpack.c.l.b16 %v497
        %v1237 = vunpack.c.l.b16 %v498
        %v1238 = vunpack.c.l.b16 %v499
        %v1239 = vunpack.c.l.b16 %v500
        %v1240 = vunpack.c.l.b16 %v501
        %v1241 = vunpack.c.l.b16 %v502
        %v1242 = vunpack.c.l.b16 %v503
        %v1243 = vunpack.c.l.b16 %v504
        %v1244 = vunpack.c.l.b16 %v505
        %v1245 = vunpack.c.l.b16 %v506
        %v1246 = vunpack.c.l.b16 %v507
        %v1247 = vunpack.c.l.b16 %v508
        %v1248 = vunpack.c.l.b16 %v509
        %v1249 = vunpack.c.l.b16 %v510
        %v1250 = vunpack.c.l.b16 %v511
        %v1251 = vunpack.c.l.b16 %v512
        %v1252 = vunpack.c.l.b16 %v513
        %v1253 = vunpack.c.l.b16 %v514
        %v1254 = vunpack.c.l.b16 %v515
        %v1255 = vunpack.c.l.b16 %v516
        %v1256 = vunpack.c.l.b16 %v517
        %v1257 = vunpack.c.l.b16 %v518
        %v1258 = vunpack.c.l.b16 %v519
        %v1259 = vunpack.c.l.b16 %v520
        %v1260 = vunpack.c.l.b16 %v521
        %v1261 = vunpack.c.l.b16 %v522
        %v1262 = vunpack.c.l.b16 %v523
        %v1263 = vunpack.c.l.b16 %v524
        %v1264 = vunpack.c.l.b16 %v525
        %v1265 = vunpack.c.l.b16 %v526
        %v1266 = vunpack.c.l.b16 %v527
        %v1267 = vunpack.c.l.b16 %v528
        %v1268 = vunpack.c.l.b16 %v529
        %v1269 = vunpack.c.l.b16 %v530
        %v1270 = vunpack.c.l.b16 %v531
        %v1271 = vunpack.c.l.b16 %v532
        %v1272 = vunpack.c.l.b16 %v533
        %v1273 = vunpack.c.l.b16 %v534
        %v1274 = vunpack.c.l.b16 %v535
        %v1275 = vunpack.c.l.b16 %v536
        %v1276 = vunpack.c.l.b16 %v537
        %v1277 = vunpack.c.l.b16 %v538
        %v1278 = vunpack.c.l.b16 %v539
        %v1279 = vunpack.c.l.b16 %v540
        %v1280 = vunpack.c.l.b16 %v541
        %v1281 = vunpack.c.l.b16 %v542
        %v1282 = vunpack.c.l.b16 %v543
        %v1283 = vunpack.c.l.b16 %v544
        %v1284 = vunpack.c.l.b16 %v545
        %v1285 = vunpack.c.l.b16 %v546
        %v1286 = vunpack.c.l.b16 %v547
        %v1287 = vunpack.c.l.b16 %v548
        %v1288 = vunpack.c.l.b16 %v549
        %v1289 = vunpack.c.l.b16 %v550
        %v1290 = vunpack.c.l.b16 %v551
        %v1291 = vunpack.c.l.b16 %v552
        %v1292 = vunpack.c.l.b16 %v553
        %v1293 = vunpack.c.l.b16 %v554
        %v1294 = vunpack.c.l.b16 %v555
        %v1295 = vunpack.c.l.b16 %v556
        %v1296 = vunpack.c.l.b16 %v557
        %v1297 = vunpack.c.l.b16 %v558
        %v1298 = vunpack.c.l.b16 %v559
        %v1299 = vunpack.c.l.b16 %v560
        %v1300 = vunpack.c.l.b16 %v561
        %v1301 = vunpack.c.l.b16 %v562
        %v1302 = vunpack.c.l.b16 %v563
        %v1303 = vpack.c.b16 %v985, %v984
        %v1304 = vpack.c.b16 %v987, %v986
        %v1305 = vpack.c.b16 %v989, %v988
        %v1306 = vpack.c.b16 %v991, %v990
        %v1307 = vpack.c.b16 %v993, %v992
        %v1308 = vpack.c.b16 %v995, %v994
        %v1309 = vpack.c.b16 %v997, %v996
        %v1310 = vpack.c.b16 %v999, %v998
        %v1311 = vpack.c.b16 %v1001, %v1000
        %v1312 = vpack.c.b16 %v1003, %v1002
        %v1313 = vpack.c.b16 %v1005, %v1004
        %v1314 = vpack.c.b16 %v1007, %v1006
        %v1315 = vpack.c.b16 %v1009, %v1008
        %v1316 = vpack.c.b16 %v1011, %v1010
        %v1317 = vpack.c.b16 %v1013, %v1012
        %v1318 = vpack.c.b16 %v1015, %v1014
        %v1319 = vpack.c.b16 %v1017, %v1016
        %v1320 = vpack.c.b16 %v1019, %v1018
        %v1321 = vpack.c.b16 %v1021, %v1020
        %v1322 = vpack.c.b16 %v1023, %v1022
        %v1323 = vpack.c.b16 %v1025, %v1024
        %v1324 = vpack.c.b16 %v1027, %v1026
        %v1325 = vpack.c.b16 %v1029, %v1028
        %v1326 = vpack.c.b16 %v1031, %v1030
        %v1327 = vpack.c.b16 %v1033, %v1032
        %v1328 = vpack.c.b16 %v1035, %v1034
        %v1329 = vpack.c.b16 %v1037, %v1036
        %v1330 = vpack.c.b16 %v1039, %v1038
        %v1331 = vpack.c.b16 %v1041, %v1040
        %v1332 = vpack.c.b16 %v1043, %v1042
        %v1333 = vpack.c.b16 %v1045, %v1044
        %v1334 = vpack.c.b16 %v1047, %v1046
        %v1335 = vpack.c.b16 %v1049, %v1048
        %v1336 = vpack.c.b16 %v1051, %v1050
        %v1337 = vpack.c.b16 %v1053, %v1052
        %v1338 = vpack.c.b16 %v1055, %v1054
        %v1339 = vpack.c.b16 %v1057, %v1056
        %v1340 = vpack.c.b16 %v1059, %v1058
        %v1341 = vpack.c.b16 %v1061, %v1060
        %v1342 = vpack.c.b16 %v1063, %v1062
        %v1343 = vpack.c.b16 %v1065, %v1064
        %v1344 = vpack.c.b16 %v1067, %v1066
        %v1345 = vpack.c.b16 %v1069, %v1068
        %v1346 = vpack.c.b16 %v1071, %v1070
        %v1347 = vpack.c.b16 %v1073, %v1072
        %v1348 = vpack.c.b16 %v1075, %v1074
        %v1349 = vpack.c.b16 %v1077, %v1076
        %v1350 = vpack.c.b16 %v1079, %v1078
        %v1351 = vpack.c.b16 %v1081, %v1080
        %v1352 = vpack.c.b16 %v1083, %v1082
        %v1353 = vpack.c.b16 %v1085, %v1084
        %v1354 = vpack.c.b16 %v1087, %v1086
        %v1355 = vpack.c.b16 %v1089, %v1088
        %v1356 = vpack.c.b16 %v1091, %v1090
        %v1357 = vpack.c.b16 %v1093, %v1092
        %v1358 = vpack.c.b16 %v1095, %v1094
        %v1359 = vpack.c.b16 %v1097, %v1096
        %v1360 = vpack.c.b16 %v1099, %v1098
        %v1361 = vpack.c.b16 %v1101, %v1100
        %v1362 = vpack.c.b16 %v1103, %v1102
        %v1363 = vpack.c.b16 %v1105, %v1104
        %v1364 = vpack.c.b16 %v1107, %v1106
        %v1365 = vpack.c.b16 %v1109, %v1108
        %v1366 = vpack.c.b16 %v1111, %v1110
        %v1367 = vpack.c.b16 %v1113, %v1112
        %v1368 = vpack.c.b16 %v1115, %v1114
        %v1369 = vpack.c.b16 %v1117, %v1116
        %v1370 = vpack.c.b16 %v1119, %v1118
        %v1371 = vpack.c.b16 %v1121, %v1120
        %v1372 = vpack.c.b16 %v1123, %v1122
        %v1373 = vpack.c.b16 %v1125, %v1124
        %v1374 = vpack.c.b16 %v1127, %v1126
        %v1375 = vpack.c.b16 %v1129, %v1128
        %v1376 = vpack.c.b16 %v1131, %v1130
        %v1377 = vpack.c.b16 %v1133, %v1132
        %v1378 = vpack.c.b16 %v1135, %v1134
        %v1379 = vpack.c.b16 %v1137, %v1136
        %v1380 = vpack.c.b16 %v1139, %v1138
        %v1381 = vpack.c.b16 %v1141, %v1140
        %v1382 = vpack.c.b16 %v1143, %v1142
        %v1383 = vpack.c.b16 %v1145, %v1144
        %v1384 = vpack.c.b16 %v1147, %v1146
        %v1385 = vpack.c.b16 %v1149, %v1148
        %v1386 = vpack.c.b16 %v1151, %v1150
        %v1387 = vpack.c.b16 %v1153, %v1152
        %v1388 = vpack.c.b16 %v1155, %v1154
        %v1389 = vpack.c.b16 %v1157, %v1156
        %v1390 = vpack.c.b16 %v1159, %v1158
        %v1391 = vpack.c.b16 %v1161, %v1160
        %v1392 = vpack.c.b16 %v1163, %v1162
        %v1393 = vpack.c.b16 %v1165, %v1164
        %v1394 = vpack.c.b16 %v1167, %v1166
        %v1395 = vpack.c.b16 %v1169, %v1168
        %v1396 = vpack.c.b16 %v1171, %v1170
        %v1397 = vpack.c.b16 %v1173, %v1172
        %v1398 = vpack.c.b16 %v1175, %v1174
        %v1399 = vpack.c.b16 %v1177, %v1176
        %v1400 = vpack.c.b16 %v1179, %v1178
        %v1401 = vpack.c.b16 %v1181, %v1180
        %v1402 = vpack.c.b16 %v1183, %v1182
        %v1403 = vpack.c.b16 %v1185, %v1184
        %v1404 = vpack.c.b16 %v1187, %v1186
        %v1405 = vpack.c.b16 %v1189, %v1188
        %v1406 = vpack.c.b16 %v1191, %v1190
        %v1407 = vpack.c.b16 %v1193, %v1192
        %v1408 = vpack.c.b16 %v1195, %v1194
        %v1409 = vpack.c.b16 %v1197, %v1196
        %v1410 = vpack.c.b16 %v1199, %v1198
        %v1411 = vpack.c.b16 %v1201, %v1200
        %v1412 = vpack.c.b16 %v1203, %v1202
        %v1413 = vpack.c.b16 %v1205, %v1204
        %v1414 = vpack.c.b16 %v1207, %v1206
        %v1415 = vpack.c.b16 %v1209, %v1208
        %v1416 = vpack.c.b16 %v1211, %v1210
        %v1417 = vpack.c.b16 %v1213, %v1212
        %v1418 = vpack.c.b16 %v1215, %v1214
        %v1419 = vpack.c.b16 %v1217, %v1216
        %v1420 = vpack.c.b16 %v1219, %v1218
        %v1421 = vpack.c.b16 %v1221, %v1220
        %v1422 = vpack.c.b16 %v1223, %v1222
        %v1423 = vpack.c.b16 %v1225, %v1224
        %v1424 = vpack.c.b16 %v1227, %v1226
        %v1425 = vpack.c.b16 %v1229, %v1228
        %v1426 = vpack.c.b16 %v1231, %v1230
        %v1427 = vpack.c.b16 %v1233, %v1232
        %v1428 = vpack.c.b16 %v1235, %v1234
        %v1429 = vpack.c.b16 %v1237, %v1236
        %v1430 = vpack.c.b16 %v1239, %v1238
        %v1431 = vpack.c.b16 %v1241, %v1240
        %v1432 = vpack.c.b16 %v1243, %v1242
        %v1433 = vpack.c.b16 %v1245, %v1244
        %v1434 = vpack.c.b16 %v1247, %v1246
        %v1435 = vpack.c.b16 %v1249, %v1248
        %v1436 = vpack.c.b16 %v1251, %v1250
        %v1437 = vpack.c.b16 %v1253, %v1252
        %v1438 = vpack.c.b16 %v1255, %v1254
        %v1439 = vpack.c.b16 %v1257, %v1256
        %v1440 = vpack.c.b16 %v1259, %v1258
        %v1441 = vpack.c.b16 %v1261, %v1260
        %v1442 = vpack.c.b16 %v1263, %v1262
        %v1443 = vpack.c.b16 %v1265, %v1264
        %v1444 = vpack.c.b16 %v1267, %v1266
        %v1445 = vpack.c.b16 %v1269, %v1268
        %v1446 = vpack.c.b16 %v1271, %v1270
        %v1447 = vpack.c.b16 %v1273, %v1272
        %v1448 = vpack.c.b16 %v1275, %v1274
        %v1449 = vpack.c.b16 %v1277, %v1276
        %v1450 = vpack.c.b16 %v1279, %v1278
        %v1451 = vpack.c.b16 %v1281, %v1280
        %v1452 = vpack.c.b16 %v1283, %v1282
        %v1453 = vpack.c.b16 %v1285, %v1284
        %v1454 = vpack.c.b16 %v1287, %v1286
        %v1455 = vpack.c.b16 %v1289, %v1288
        %v1456 = vpack.c.b16 %v1291, %v1290
        %v1457 = vpack.c.b16 %v1293, %v1292
        %v1458 = vpack.c.b16 %v1295, %v1294
        %v1459 = vpack.c.b16 %v1297, %v1296
        %v1460 = vpack.c.b16 %v1299, %v1298
        %v1461 = vpack.c.b16 %v1301, %v1300
        %v1462 = vpack.c.b16 %v1302, %v1302
        %vm1622 = vcmask 949248
        %v1624 = vsel %vm1622, %v645, 0
        %vm1626 = vcmask 1041408
        %v1628 = vsel %vm1626, %v1462, 0
        %1630 = vmatpush.bf16.msra.mxu0 %v1310
        %1631 = vmatpush.bf16.msra.mxu0 %v1309
        %1632 = vmatpush.bf16.msra.mxu0 %v1308
        %1633 = vmatpush.bf16.msra.mxu0 %v1307
        %1634 = vmatpush.bf16.msra.mxu0 %v1306
        %1635 = vmatpush.bf16.msra.mxu0 %v1305
        %1636 = vmatpush.bf16.msra.mxu0 %v1304
        %1637 = vmatpush.bf16.msra.mxu0 %v1303
        %1638 = vmatmul.bf16.gmra.mxu0 %v626
        %v1639 = vpop.f32.mrf.mxu0
        %v1640 = vadd.f32 %v565, %v1639
        %v1641 = vpop.f32.mrf.mxu0
        %v1642 = vadd.f32 %v565, %v1641
        %1643 = vdwg.mxu0
        %1644 = vmatpush.bf16.msra.mxu0 %v1318
        %1645 = vmatpush.bf16.msra.mxu0 %v1317
        %1646 = vmatpush.bf16.msra.mxu0 %v1316
        %1647 = vmatpush.bf16.msra.mxu0 %v1315
        %1648 = vmatpush.bf16.msra.mxu0 %v1314
        %1649 = vmatpush.bf16.msra.mxu0 %v1313
        %1650 = vmatpush.bf16.msra.mxu0 %v1312
        %1651 = vmatpush.bf16.msra.mxu0 %v1311
        %1652 = vmatmul.bf16.gmra.mxu0 %v627
        %v1653 = vpop.f32.mrf.mxu0
        %v1654 = vadd.f32 %v1640, %v1653
        %v1655 = vpop.f32.mrf.mxu0
        %v1656 = vadd.f32 %v1642, %v1655
        %1657 = vdwg.mxu0
        %1658 = vmatpush.bf16.msra.mxu0 %v1326
        %1659 = vmatpush.bf16.msra.mxu0 %v1325
        %1660 = vmatpush.bf16.msra.mxu0 %v1324
        %1661 = vmatpush.bf16.msra.mxu0 %v1323
        %1662 = vmatpush.bf16.msra.mxu0 %v1322
        %1663 = vmatpush.bf16.msra.mxu0 %v1321
        %1664 = vmatpush.bf16.msra.mxu0 %v1320
        %1665 = vmatpush.bf16.msra.mxu0 %v1319
        %1666 = vmatmul.bf16.gmra.mxu0 %v628
        %v1667 = vpop.f32.mrf.mxu0
        %v1668 = vadd.f32 %v1654, %v1667
        %v1669 = vpop.f32.mrf.mxu0
        %v1670 = vadd.f32 %v1656, %v1669
        %1671 = vdwg.mxu0
        %1672 = vmatpush.bf16.msra.mxu0 %v1334
        %1673 = vmatpush.bf16.msra.mxu0 %v1333
        %1674 = vmatpush.bf16.msra.mxu0 %v1332
        %1675 = vmatpush.bf16.msra.mxu0 %v1331
        %1676 = vmatpush.bf16.msra.mxu0 %v1330
        %1677 = vmatpush.bf16.msra.mxu0 %v1329
        %1678 = vmatpush.bf16.msra.mxu0 %v1328
        %1679 = vmatpush.bf16.msra.mxu0 %v1327
        %1680 = vmatmul.bf16.gmra.mxu0 %v629
        %v1681 = vpop.f32.mrf.mxu0
        %v1682 = vadd.f32 %v1668, %v1681
        %v1683 = vpop.f32.mrf.mxu0
        %v1684 = vadd.f32 %v1670, %v1683
        %1685 = vdwg.mxu0
        %1686 = vmatpush.bf16.msra.mxu0 %v1342
        %1687 = vmatpush.bf16.msra.mxu0 %v1341
        %1688 = vmatpush.bf16.msra.mxu0 %v1340
        %1689 = vmatpush.bf16.msra.mxu0 %v1339
        %1690 = vmatpush.bf16.msra.mxu0 %v1338
        %1691 = vmatpush.bf16.msra.mxu0 %v1337
        %1692 = vmatpush.bf16.msra.mxu0 %v1336
        %1693 = vmatpush.bf16.msra.mxu0 %v1335
        %1694 = vmatmul.bf16.gmra.mxu0 %v630
        %v1695 = vpop.f32.mrf.mxu0
        %v1696 = vadd.f32 %v1682, %v1695
        %v1697 = vpop.f32.mrf.mxu0
        %v1698 = vadd.f32 %v1684, %v1697
        %1699 = vdwg.mxu0
        %1700 = vmatpush.bf16.msra.mxu0 %v1350
        %1701 = vmatpush.bf16.msra.mxu0 %v1349
        %1702 = vmatpush.bf16.msra.mxu0 %v1348
        %1703 = vmatpush.bf16.msra.mxu0 %v1347
        %1704 = vmatpush.bf16.msra.mxu0 %v1346
        %1705 = vmatpush.bf16.msra.mxu0 %v1345
        %1706 = vmatpush.bf16.msra.mxu0 %v1344
        %1707 = vmatpush.bf16.msra.mxu0 %v1343
        %1708 = vmatmul.bf16.gmra.mxu0 %v631
        %v1709 = vpop.f32.mrf.mxu0
        %v1710 = vadd.f32 %v1696, %v1709
        %v1711 = vpop.f32.mrf.mxu0
        %v1712 = vadd.f32 %v1698, %v1711
        %1713 = vdwg.mxu0
        %1714 = vmatpush.bf16.msra.mxu0 %v1358
        %1715 = vmatpush.bf16.msra.mxu0 %v1357
        %1716 = vmatpush.bf16.msra.mxu0 %v1356
        %1717 = vmatpush.bf16.msra.mxu0 %v1355
        %1718 = vmatpush.bf16.msra.mxu0 %v1354
        %1719 = vmatpush.bf16.msra.mxu0 %v1353
        %1720 = vmatpush.bf16.msra.mxu0 %v1352
        %1721 = vmatpush.bf16.msra.mxu0 %v1351
        %1722 = vmatmul.bf16.gmra.mxu0 %v632
        %v1723 = vpop.f32.mrf.mxu0
        %v1724 = vadd.f32 %v1710, %v1723
        %v1725 = vpop.f32.mrf.mxu0
        %v1726 = vadd.f32 %v1712, %v1725
        %1727 = vdwg.mxu0
        %1728 = vmatpush.bf16.msra.mxu0 %v1366
        %1729 = vmatpush.bf16.msra.mxu0 %v1365
        %1730 = vmatpush.bf16.msra.mxu0 %v1364
        %1731 = vmatpush.bf16.msra.mxu0 %v1363
        %1732 = vmatpush.bf16.msra.mxu0 %v1362
        %1733 = vmatpush.bf16.msra.mxu0 %v1361
        %1734 = vmatpush.bf16.msra.mxu0 %v1360
        %1735 = vmatpush.bf16.msra.mxu0 %v1359
        %1736 = vmatmul.bf16.gmra.mxu0 %v633
        %v1737 = vpop.f32.mrf.mxu0
        %v1738 = vadd.f32 %v1724, %v1737
        %v1739 = vpop.f32.mrf.mxu0
        %v1740 = vadd.f32 %v1726, %v1739
        %1741 = vdwg.mxu0
        %1742 = vmatpush.bf16.msra.mxu0 %v1374
        %1743 = vmatpush.bf16.msra.mxu0 %v1373
        %1744 = vmatpush.bf16.msra.mxu0 %v1372
        %1745 = vmatpush.bf16.msra.mxu0 %v1371
        %1746 = vmatpush.bf16.msra.mxu0 %v1370
        %1747 = vmatpush.bf16.msra.mxu0 %v1369
        %1748 = vmatpush.bf16.msra.mxu0 %v1368
        %1749 = vmatpush.bf16.msra.mxu0 %v1367
        %1750 = vmatmul.bf16.gmra.mxu0 %v634
        %v1751 = vpop.f32.mrf.mxu0
        %v1752 = vadd.f32 %v1738, %v1751
        %v1753 = vpop.f32.mrf.mxu0
        %v1754 = vadd.f32 %v1740, %v1753
        %1755 = vdwg.mxu0
        %1756 = vmatpush.bf16.msra.mxu0 %v1382
        %1757 = vmatpush.bf16.msra.mxu0 %v1381
        %1758 = vmatpush.bf16.msra.mxu0 %v1380
        %1759 = vmatpush.bf16.msra.mxu0 %v1379
        %1760 = vmatpush.bf16.msra.mxu0 %v1378
        %1761 = vmatpush.bf16.msra.mxu0 %v1377
        %1762 = vmatpush.bf16.msra.mxu0 %v1376
        %1763 = vmatpush.bf16.msra.mxu0 %v1375
        %1764 = vmatmul.bf16.gmra.mxu0 %v635
        %v1765 = vpop.f32.mrf.mxu0
        %v1766 = vadd.f32 %v1752, %v1765
        %v1767 = vpop.f32.mrf.mxu0
        %v1768 = vadd.f32 %v1754, %v1767
        %1769 = vdwg.mxu0
        %1770 = vmatpush.bf16.msra.mxu0 %v1390
        %1771 = vmatpush.bf16.msra.mxu0 %v1389
        %1772 = vmatpush.bf16.msra.mxu0 %v1388
        %1773 = vmatpush.bf16.msra.mxu0 %v1387
        %1774 = vmatpush.bf16.msra.mxu0 %v1386
        %1775 = vmatpush.bf16.msra.mxu0 %v1385
        %1776 = vmatpush.bf16.msra.mxu0 %v1384
        %1777 = vmatpush.bf16.msra.mxu0 %v1383
        %1778 = vmatmul.bf16.gmra.mxu0 %v636
        %v1779 = vpop.f32.mrf.mxu0
        %v1780 = vadd.f32 %v1766, %v1779
        %v1781 = vpop.f32.mrf.mxu0
        %v1782 = vadd.f32 %v1768, %v1781
        %1783 = vdwg.mxu0
        %1784 = vmatpush.bf16.msra.mxu0 %v1398
        %1785 = vmatpush.bf16.msra.mxu0 %v1397
        %1786 = vmatpush.bf16.msra.mxu0 %v1396
        %1787 = vmatpush.bf16.msra.mxu0 %v1395
        %1788 = vmatpush.bf16.msra.mxu0 %v1394
        %1789 = vmatpush.bf16.msra.mxu0 %v1393
        %1790 = vmatpush.bf16.msra.mxu0 %v1392
        %1791 = vmatpush.bf16.msra.mxu0 %v1391
        %1792 = vmatmul.bf16.gmra.mxu0 %v637
        %v1793 = vpop.f32.mrf.mxu0
        %v1794 = vadd.f32 %v1780, %v1793
        %v1795 = vpop.f32.mrf.mxu0
        %v1796 = vadd.f32 %v1782, %v1795
        %1797 = vdwg.mxu0
        %1798 = vmatpush.bf16.msra.mxu0 %v1406
        %1799 = vmatpush.bf16.msra.mxu0 %v1405
        %1800 = vmatpush.bf16.msra.mxu0 %v1404
        %1801 = vmatpush.bf16.msra.mxu0 %v1403
        %1802 = vmatpush.bf16.msra.mxu0 %v1402
        %1803 = vmatpush.bf16.msra.mxu0 %v1401
        %1804 = vmatpush.bf16.msra.mxu0 %v1400
        %1805 = vmatpush.bf16.msra.mxu0 %v1399
        %1806 = vmatmul.bf16.gmra.mxu0 %v638
        %v1807 = vpop.f32.mrf.mxu0
        %v1808 = vadd.f32 %v1794, %v1807
        %v1809 = vpop.f32.mrf.mxu0
        %v1810 = vadd.f32 %v1796, %v1809
        %1811 = vdwg.mxu0
        %1812 = vmatpush.bf16.msra.mxu0 %v1414
        %1813 = vmatpush.bf16.msra.mxu0 %v1413
        %1814 = vmatpush.bf16.msra.mxu0 %v1412
        %1815 = vmatpush.bf16.msra.mxu0 %v1411
        %1816 = vmatpush.bf16.msra.mxu0 %v1410
        %1817 = vmatpush.bf16.msra.mxu0 %v1409
        %1818 = vmatpush.bf16.msra.mxu0 %v1408
        %1819 = vmatpush.bf16.msra.mxu0 %v1407
        %1820 = vmatmul.bf16.gmra.mxu0 %v639
        %v1821 = vpop.f32.mrf.mxu0
        %v1822 = vadd.f32 %v1808, %v1821
        %v1823 = vpop.f32.mrf.mxu0
        %v1824 = vadd.f32 %v1810, %v1823
        %1825 = vdwg.mxu0
        %1826 = vmatpush.bf16.msra.mxu0 %v1422
        %1827 = vmatpush.bf16.msra.mxu0 %v1421
        %1828 = vmatpush.bf16.msra.mxu0 %v1420
        %1829 = vmatpush.bf16.msra.mxu0 %v1419
        %1830 = vmatpush.bf16.msra.mxu0 %v1418
        %1831 = vmatpush.bf16.msra.mxu0 %v1417
        %1832 = vmatpush.bf16.msra.mxu0 %v1416
        %1833 = vmatpush.bf16.msra.mxu0 %v1415
        %1834 = vmatmul.bf16.gmra.mxu0 %v640
        %v1835 = vpop.f32.mrf.mxu0
        %v1836 = vadd.f32 %v1822, %v1835
        %v1837 = vpop.f32.mrf.mxu0
        %v1838 = vadd.f32 %v1824, %v1837
        %1839 = vdwg.mxu0
        %1840 = vmatpush.bf16.msra.mxu0 %v1430
        %1841 = vmatpush.bf16.msra.mxu0 %v1429
        %1842 = vmatpush.bf16.msra.mxu0 %v1428
        %1843 = vmatpush.bf16.msra.mxu0 %v1427
        %1844 = vmatpush.bf16.msra.mxu0 %v1426
        %1845 = vmatpush.bf16.msra.mxu0 %v1425
        %1846 = vmatpush.bf16.msra.mxu0 %v1424
        %1847 = vmatpush.bf16.msra.mxu0 %v1423
        %1848 = vmatmul.bf16.gmra.mxu0 %v641
        %v1849 = vpop.f32.mrf.mxu0
        %v1850 = vadd.f32 %v1836, %v1849
        %v1851 = vpop.f32.mrf.mxu0
        %v1852 = vadd.f32 %v1838, %v1851
        %1853 = vdwg.mxu0
        %1854 = vmatpush.bf16.msra.mxu0 %v1438
        %1855 = vmatpush.bf16.msra.mxu0 %v1437
        %1856 = vmatpush.bf16.msra.mxu0 %v1436
        %1857 = vmatpush.bf16.msra.mxu0 %v1435
        %1858 = vmatpush.bf16.msra.mxu0 %v1434
        %1859 = vmatpush.bf16.msra.mxu0 %v1433
        %1860 = vmatpush.bf16.msra.mxu0 %v1432
        %1861 = vmatpush.bf16.msra.mxu0 %v1431
        %1862 = vmatmul.bf16.gmra.mxu0 %v642
        %v1863 = vpop.f32.mrf.mxu0
        %v1864 = vadd.f32 %v1850, %v1863
        %v1865 = vpop.f32.mrf.mxu0
        %v1866 = vadd.f32 %v1852, %v1865
        %1867 = vdwg.mxu0
        %1868 = vmatpush.bf16.msra.mxu0 %v1446
        %1869 = vmatpush.bf16.msra.mxu0 %v1445
        %1870 = vmatpush.bf16.msra.mxu0 %v1444
        %1871 = vmatpush.bf16.msra.mxu0 %v1443
        %1872 = vmatpush.bf16.msra.mxu0 %v1442
        %1873 = vmatpush.bf16.msra.mxu0 %v1441
        %1874 = vmatpush.bf16.msra.mxu0 %v1440
        %1875 = vmatpush.bf16.msra.mxu0 %v1439
        %1876 = vmatmul.bf16.gmra.mxu0 %v643
        %v1877 = vpop.f32.mrf.mxu0
        %v1878 = vadd.f32 %v1864, %v1877
        %v1879 = vpop.f32.mrf.mxu0
        %v1880 = vadd.f32 %v1866, %v1879
        %1881 = vdwg.mxu0
        %1882 = vmatpush.bf16.msra.mxu0 %v1454
        %1883 = vmatpush.bf16.msra.mxu0 %v1453
        %1884 = vmatpush.bf16.msra.mxu0 %v1452
        %1885 = vmatpush.bf16.msra.mxu0 %v1451
        %1886 = vmatpush.bf16.msra.mxu0 %v1450
        %1887 = vmatpush.bf16.msra.mxu0 %v1449
        %1888 = vmatpush.bf16.msra.mxu0 %v1448
        %1889 = vmatpush.bf16.msra.mxu0 %v1447
        %1890 = vmatmul.bf16.gmra.mxu0 %v644
        %v1891 = vpop.f32.mrf.mxu0
        %v1892 = vadd.f32 %v1878, %v1891
        %v1893 = vpop.f32.mrf.mxu0
        %v1894 = vadd.f32 %v1880, %v1893
        %1895 = vdwg.mxu0
        %1896 = vmatpush.bf16.msra.mxu0 %v1628
        %1897 = vmatpush.bf16.msra.mxu0 %v1461
        %1898 = vmatpush.bf16.msra.mxu0 %v1460
        %1899 = vmatpush.bf16.msra.mxu0 %v1459
        %1900 = vmatpush.bf16.msra.mxu0 %v1458
        %1901 = vmatpush.bf16.msra.mxu0 %v1457
        %1902 = vmatpush.bf16.msra.mxu0 %v1456
        %1903 = vmatpush.bf16.msra.mxu0 %v1455
        %1904 = vmatmul.bf16.gmra.mxu0 %v1624
        %v1905 = vpop.f32.mrf.mxu0
        %v1906 = vadd.f32 %v1892, %v1905
        %v1907 = vpop.f32.mrf.mxu0
        %v1908 = vadd.f32 %v1894, %v1907
        %1909 = vdwg.mxu0
        %1910 = vadd.xlane.f32.xlu0 %v1906
        %v1911 = vpop.xlane.xlu0 %1910
        %1912 = vadd.xlane.f32.xlu0 %v1908
        %v1913 = vpop.xlane.xlu0 %1912
        %v1914 = vmul.f32 %v1911, 0.010416667
        %v1915 = vmul.f32 %v1913, 0.010416667
        %v1916 = vsub.f32 %v1906, %v1914
        %v1917 = vsub.f32 %v1908, %v1915
        %v1918 = vlaneseq
        %v1919 = vand.u32 %v1918, 127
        %vm1920 = vcmp.lt.s32.totalorder %v1919, 96
        %v1921 = vsel %vm1920, 1, 0
        %vm1922 = vcmp.eq.s32.totalorder %v1921, 1
        %v1923 = vsel %vm1922, %v1916, 0.0
        %v1924 = vsel %vm1922, %v1917, 0.0
        %v1925 = vmul.f32 %v1923, %v1923
        %v1926 = vmul.f32 %v1924, %v1924
        %1927 = vadd.xlane.f32.xlu0 %v1925
        %v1928 = vpop.xlane.xlu0 %1927
        %1929 = vadd.xlane.f32.xlu0 %v1926
        %v1930 = vpop.xlane.xlu0 %1929
        %v1931 = vmul.f32 %v1928, 0.010416667
        %v1932 = vmul.f32 %v1930, 0.010416667
        %v1933 = vadd.f32 %v1931, 1e-05
        %v1934 = vadd.f32 %v1932, 1e-05
        %v1935 = vrsqrt.pop %v1933
        %v1936 = vmul.f32 %v1935, %v1933
        %v1937 = vmul.f32 %v1936, %v1935
        %v1938 = vmul.f32 0.5, %v1937
        %v1939 = vsub.f32 1.5, %v1938
        %v1940 = vmul.f32 %v1935, %v1939
        %vm1941 = vweird.f32 %v1933
        %vm1942 = vweird.f32 %v1935
        %vm1943 = vmor %vm1941, %vm1942
        %v1944 = vsel %vm1943, %v1935, %v1940
        %v1945 = vrsqrt.pop %v1934
        %v1946 = vmul.f32 %v1945, %v1934
        %v1947 = vmul.f32 %v1946, %v1945
        %v1948 = vmul.f32 0.5, %v1947
        %v1949 = vsub.f32 1.5, %v1948
        %v1950 = vmul.f32 %v1945, %v1949
        %vm1951 = vweird.f32 %v1934
        %vm1952 = vweird.f32 %v1945
        %vm1953 = vmor %vm1951, %vm1952
        %v1954 = vsel %vm1953, %v1945, %v1950
        %v1955 = vmul.f32 %v1923, %v1944
        %v1956 = vmul.f32 %v1924, %v1954
        %v1957 = vperm.slane %v564, 1
        %v1958 = vmul.f32 %v1955, %v1957
        %v1959 = vmul.f32 %v1956, %v1957
        %v1960 = vperm.slane %v564, 2
        %v1961 = vadd.f32 %v1958, %v1960
        %v1962 = vadd.f32 %v1959, %v1960
        %1963 = vst [vmem:[%s222] sm:$0xff] %v1961
        %1964 = vst [vmem:[%s222 + $0x8] sm:$0xff] %v1962
        %s1965 = sand.u32 %s97, 1
        %s1966 = scalar_lea.sflag [#allocation4], %s1965
        %s1967 = sand.u32 %s97, 1
        %s1968 = smul.addr %s1967, 16
        %s1969 = scalar_lea.vmem [#allocation8], %s1968
        // Predicated region
        $region45: #{tpu_custom_call.1} parent=31 // pred_check
          %p1970 = pneg %p107
        $region46: #{tpu_custom_call.1} parent=31 // pred_check_branch
          %1972 = sbr.rel (%p1970) target = $region48
        $region47: #{tpu_custom_call.1} parent=31 // pred_region
          %s1973 = smul.u32 2, %s21
          %1975 = vsyncadd %s1966, 0
          %s1976 = smul.addr %s1973, 8
          %s1977 = scalar_lea.hbm %s3, %s1976
          %s1978 = sshll.u32 %s1969, 4
          %s1979 = int_to_ptr.vmem [resolvable:$true] %s1978
          %s1980 = sshll.u32 %s1977, 4
          %s1981 = int_to_ptr.hbm [resolvable:$true] %s1980
          %1986 = dma.vmem_to_hbm [thread:$0]  %s1979, 256, %s1981, %s1966, 128, 128, 8
        $region48: #{tpu_custom_call.1} parent=31 // pred_fallthru
          _
      $region32: #{tpu_custom_call.1} parent=5 // pred_fallthru
        _
      %p1987 = scmp.le.s32.totalorder 2, %s16
      // Predicated region
      $region49: #{tpu_custom_call.1} parent=5 // pred_check
        %p1988 = pneg %p1987
      $region50: #{tpu_custom_call.1} parent=5 // pred_check_branch
        %1990 = sbr.rel (%p1988) target = $region52
      $region51: #{tpu_custom_call.1} parent=5 // pred_region
        %s1991 = ssub.s32 %s16, 2
        // Predicated region
        $region53: #{tpu_custom_call.1} parent=51 // pred_check
          %p1992 = pneg %p113
        $region54: #{tpu_custom_call.1} parent=51 // pred_check_branch
          %1994 = sbr.rel (%p1992) target = $region56
        $region55: #{tpu_custom_call.1} parent=51 // pred_region
          %s1995 = sand.u32 %s98, 1
          %s1996 = scalar_lea.sflag [#allocation4], %s1995
          %s1997 = sand.u32 %s98, 1
          %s1998 = smul.addr %s1997, 16
          %s1999 = scalar_lea.vmem [#allocation8], %s1998
          %2001 = dma.done %s1996, 256
        $region56: #{tpu_custom_call.1} parent=51 // pred_fallthru
          _
      $region52: #{tpu_custom_call.1} parent=5 // pred_fallthru
        _
    $region6: #{tpu_custom_call.1} parent=1 // loop_footer
      %s20 = sadd.s32 1, %s16
    $region7: #{tpu_custom_call.1} parent=1 // loop_footer_branch
      %15 = sbr.rel target = $region3
    $region8: #{tpu_custom_call.1} parent=1 // loop_exit
      _
    %2002 = vsyncpa [#allocation3], 1
    %s2003 = scalar_lea.sflag [#allocation3], 1
    %2004 = vsyncpa %s2003, 1
    %2005 = vsyncpa [#allocation6], 1
    %2006 = vsyncpa [#allocation4], 1
    %s2007 = scalar_lea.sflag [#allocation4], 1
    %2008 = vsyncpa %s2007, 1

</llo_original>
